<compile_context>
chip_gen: v7x
topology: tpu7x:2x2x1
jax: 0.10.0
libtpu: 0.0.40
codegen_flags: <defaults>
</compile_context>

<pallas_src>
import jax
import jax.numpy as jnp
from jax.experimental import pallas as pl
from jax.experimental.pallas import tpu as pltpu


# -----------------------------------------------------------------------------
# Pallas kernel: full decode, grid axis = time. h/c carried in VMEM scratch.
# -----------------------------------------------------------------------------
def _decoder_kernel(
    lens_ref,            # (B, 1)    int32  decode lengths (sorted descending)
    S_ref,               # (B*P, B)  f32    row b*P+p = one_hot(b)  (segment broadcast)
    ST_ref,              # (B, B*P)  f32    S transposed            (segment sum)
    enc_ref,             # (B*P, E)  f32    flattened encoder features (sorted)
    h0_ref,              # (B, D)
    c0_ref,              # (B, D)
    emb_ref,             # (1, B, M)        embedded caption tokens at timestep t
    wea_ref, bea_ref,    # encoder_att: (E, A), (1, A)
    wda_ref, bda_ref,    # decoder_att: (D, A), (1, A)
    wfa_ref, bfa_ref,    # full_att:    (A, 1), (1, 1)
    wfb_ref, bfb_ref,    # f_beta:      (D, E), (1, E)
    wie_ref,             # LSTM W_ih (embedding part): (M, 4D)
    wia_ref,             # LSTM W_ih (awe part):       (E, 4D)
    whh_ref,             # LSTM W_hh:                  (D, 4D)
    bg_ref,              # LSTM b_ih + b_hh:           (1, 4D)
    wfc_ref, bfc_ref,    # fc: (D, V), (1, V)
    preds_ref,           # out (1, B, V)
    alpha_ref,           # out (1, B*P, 1)
    h_sc,                # scratch (B, D) f32
    c_sc,                # scratch (B, D) f32
):
  f32 = jnp.float32
  t = pl.program_id(0)

  @pl.when(t == 0)
  def _():
    h_sc[...] = h0_ref[...]
    c_sc[...] = c0_ref[...]

  h = h_sc[...]                       # (B, D)
  c = c_sc[...]                       # (B, D)
  emb = emb_ref[0]                    # (B, M)
  enc = enc_ref[...]                  # (BP, E)
  S = S_ref[...]                      # (BP, B)
  ST = ST_ref[...]                    # (B, BP)
  B, D = h.shape
  BP = enc.shape[0]
  P = BP // B

  # ---- Attention (batched over all B*P pixel rows) ----
  att1 = jnp.dot(enc, wea_ref[...], preferred_element_type=f32) + bea_ref[...]   # (BP, A)
  att2 = jnp.dot(h, wda_ref[...], preferred_element_type=f32) + bda_ref[...]     # (B, A)
  att2_rep = jnp.dot(S, att2, preferred_element_type=f32)                        # (BP, A)
  pre = jnp.maximum(att1 + att2_rep, 0.0)                                        # ReLU
  att = jnp.dot(pre, wfa_ref[...], preferred_element_type=f32) + bfa_ref[...]    # (BP, 1)

  # per-image softmax over the P pixels (segmented, exact per-segment max)
  att_max_rep = jnp.zeros_like(att)
  for b in range(B):                  # static unroll, B is small
    m_b = jnp.max(att[b * P:(b + 1) * P, :], axis=0, keepdims=True)              # (1, 1)
    att_max_rep = att_max_rep + S[:, b:b + 1] * m_b
  att_exp = jnp.exp(att - att_max_rep)                                           # (BP, 1)
  denom = jnp.dot(ST, att_exp, preferred_element_type=f32)                       # (B, 1)
  inv_rep = jnp.dot(S, pl.reciprocal(denom, approx=True),
                    preferred_element_type=f32)                                  # (BP, 1)
  alpha = att_exp * inv_rep                                                      # (BP, 1)

  # attention-weighted encoding: segmented weighted sum via one MXU matmul
  awe = jnp.dot(ST, enc * alpha, preferred_element_type=f32)                     # (B, E)

  # ---- Gate (f_beta + sigmoid) ----
  gate = jax.nn.sigmoid(
      jnp.dot(h, wfb_ref[...], preferred_element_type=f32) + bfb_ref[...])       # (B, E)
  awe = gate * awe

  # ---- Fused LSTMCell, PyTorch gate order (i, f, g, o) along the 4D axis ----
  gates = (jnp.dot(emb, wie_ref[...], preferred_element_type=f32)
           + jnp.dot(awe, wia_ref[...], preferred_element_type=f32)
           + jnp.dot(h, whh_ref[...], preferred_element_type=f32)
           + bg_ref[...])                                                        # (B, 4D)
  i_g = jax.nn.sigmoid(gates[:, 0 * D:1 * D])
  f_g = jax.nn.sigmoid(gates[:, 1 * D:2 * D])
  g_g = jnp.tanh(gates[:, 2 * D:3 * D])
  o_g = jax.nn.sigmoid(gates[:, 3 * D:4 * D])
  c_new = f_g * c + i_g * g_g
  h_new = o_g * jnp.tanh(c_new)

  # ---- fc = Sequential(Linear, Softmax) over the vocab ----
  # TODO(synk): nn.Dropout(p=0.5) before fc is identity in eval mode; train-mode
  # stochastic dropout is intentionally not reproduced here.
  logits = jnp.dot(h_new, wfc_ref[...], preferred_element_type=f32) + bfc_ref[...]  # (B, V)
  lmax = jnp.max(logits, axis=1, keepdims=True)
  lexp = jnp.exp(logits - lmax)
  preds = lexp * pl.reciprocal(jnp.sum(lexp, axis=1, keepdims=True), approx=True)

  # ---- mask rows whose caption already ended; freeze their h/c ----
  active = lens_ref[...] > t                                   # (B, 1) bool
  maskf = active.astype(f32)                                   # (B, 1)
  mask_rep = jnp.dot(S, maskf, preferred_element_type=f32)     # (BP, 1)

  preds_ref[0] = preds * maskf
  alpha_ref[0] = alpha * mask_rep
  h_sc[...] = jnp.where(active, h_new, h)
  c_sc[...] = jnp.where(active, c_new, c)


def _make_decoder_call(B, P, E, D, A, M, V, T, dtype=jnp.float32):
  BP = B * P
  c2 = lambda t: (0, 0)        # constant / weight blocks (resident across T)
  c_t3 = lambda t: (t, 0, 0)   # time-sliced blocks

  in_specs = [
      pl.BlockSpec((B, 1), c2),        # lens
      pl.BlockSpec((BP, B), c2),       # S
      pl.BlockSpec((B, BP), c2),       # ST
      pl.BlockSpec((BP, E), c2),       # enc (flattened)
      pl.BlockSpec((B, D), c2),        # h0
      pl.BlockSpec((B, D), c2),        # c0
      pl.BlockSpec((1, B, M), c_t3),   # embedded tokens, one timestep per grid step
      pl.BlockSpec((E, A), c2), pl.BlockSpec((1, A), c2),      # encoder_att
      pl.BlockSpec((D, A), c2), pl.BlockSpec((1, A), c2),      # decoder_att
      pl.BlockSpec((A, 1), c2), pl.BlockSpec((1, 1), c2),      # full_att
      pl.BlockSpec((D, E), c2), pl.BlockSpec((1, E), c2),      # f_beta
      pl.BlockSpec((M, 4 * D), c2),                            # W_ih (embed part)
      pl.BlockSpec((E, 4 * D), c2),                            # W_ih (awe part)
      pl.BlockSpec((D, 4 * D), c2),                            # W_hh
      pl.BlockSpec((1, 4 * D), c2),                            # b_ih + b_hh
      pl.BlockSpec((D, V), c2), pl.BlockSpec((1, V), c2),      # fc
  ]
  out_specs = [
      pl.BlockSpec((1, B, V), c_t3),
      pl.BlockSpec((1, BP, 1), c_t3),
  ]
  out_shape = [
      jax.ShapeDtypeStruct((T, B, V), dtype),
      jax.ShapeDtypeStruct((T, BP, 1), dtype),
  ]
  return pl.pallas_call(
      _decoder_kernel,
      grid=(T,),
      in_specs=in_specs,
      out_specs=out_specs,
      out_shape=out_shape,
      scratch_shapes=[pltpu.VMEM((B, D), jnp.float32),   # h carried state
                      pltpu.VMEM((B, D), jnp.float32)],  # c carried state
      compiler_params=pltpu.CompilerParams(
          dimension_semantics=("arbitrary",)),            # time axis is sequential
  )


# -----------------------------------------------------------------------------
# Parameters (deterministic synthetic init, shapes match the nn.Module).
# -----------------------------------------------------------------------------
def init_params(key, attention_dim, embed_dim, decoder_dim, vocab_size, encoder_dim):
  ks = jax.random.split(key, 20)
  u = lambda k, shape, s=0.1: jax.random.uniform(k, shape, jnp.float32, -s, s)
  A, M, D, V, E = attention_dim, embed_dim, decoder_dim, vocab_size, encoder_dim
  p = {}
  p["embedding"] = u(ks[0], (V, M))                 # uniform(-0.1, 0.1) as in init_weights
  p["W_enc_att"] = u(ks[1], (E, A)); p["b_enc_att"] = u(ks[2], (1, A))
  p["W_dec_att"] = u(ks[3], (D, A)); p["b_dec_att"] = u(ks[4], (1, A))
  p["W_full_att"] = u(ks[5], (A, 1)); p["b_full_att"] = u(ks[6], (1, 1))
  p["W_init_h"] = u(ks[7], (E, D)); p["b_init_h"] = u(ks[8], (1, D))
  p["W_init_c"] = u(ks[9], (E, D)); p["b_init_c"] = u(ks[10], (1, D))
  p["W_f_beta"] = u(ks[11], (D, E)); p["b_f_beta"] = u(ks[12], (1, E))
  p["W_ih"] = u(ks[13], (M + E, 4 * D))             # LSTMCell input weights (i,f,g,o)
  p["W_hh"] = u(ks[14], (D, 4 * D))
  p["b_ih"] = u(ks[15], (1, 4 * D))
  p["b_hh"] = u(ks[16], (1, 4 * D))
  p["W_fc"] = u(ks[17], (D, V))                     # uniform(-0.1, 0.1) as in init_weights
  p["b_fc"] = jnp.zeros((1, V), jnp.float32)        # fc bias filled with 0
  return p


# -----------------------------------------------------------------------------
# Forward pass (mirrors DecoderWithAttention.forward).
# -----------------------------------------------------------------------------
def decoder_forward(params, encoder_out, encoded_captions, caption_lengths):
  B = encoder_out.shape[0]
  E = encoder_out.shape[-1]
  enc = encoder_out.reshape(B, -1, E)               # (B, num_pixels, E)
  P = enc.shape[1]
  D = params["W_init_h"].shape[1]
  A = params["W_enc_att"].shape[1]
  M = params["embedding"].shape[1]
  V = params["W_fc"].shape[1]

  # sort by caption length, descending (host-visible, like .tolist() in torch)
  cl = caption_lengths.reshape(B)
  sort_ind = jnp.argsort(-cl)
  cl_sorted = cl[sort_ind]
  enc = enc[sort_ind]
  caps = encoded_captions[sort_ind]

  # init hidden / cell state from mean encoder output (glue matmul)
  mean_enc = jnp.mean(enc, axis=1)
  h0 = mean_enc @ params["W_init_h"] + params["b_init_h"]
  c0 = mean_enc @ params["W_init_c"] + params["b_init_c"]

  decode_lengths = [int(x) - 1 for x in jax.device_get(cl_sorted)]   # mirrors .tolist()
  T = max(decode_lengths)

  # embedded tokens for the whole decode, time-major so the kernel slices per step
  emb_all = jnp.take(params["embedding"], caps, axis=0)       # (B, L, M)
  emb_seq = jnp.transpose(emb_all[:, :T, :], (1, 0, 2))       # (T, B, M)

  lens = jnp.asarray(decode_lengths, dtype=jnp.int32).reshape(B, 1)
  S = jnp.repeat(jnp.eye(B, dtype=jnp.float32), P, axis=0)    # (B*P, B)
  ST = jnp.transpose(S)                                       # (B, B*P)
  enc_flat = enc.reshape(B * P, E)

  # fused LSTM weight layout: (in, 4D) with gate order (i, f, g, o)
  W_ih_e = params["W_ih"][:M]                                 # (M, 4D)
  W_ih_a = params["W_ih"][M:]                                 # (E, 4D)
  b_gates = params["b_ih"] + params["b_hh"]                   # (1, 4D)

  call = _make_decoder_call(B, P, E, D, A, M, V, T)
  preds_tbv, alphas_tp1 = call(
      lens, S, ST, enc_flat, h0, c0, emb_seq,
      params["W_enc_att"], params["b_enc_att"],
      params["W_dec_att"], params["b_dec_att"],
      params["W_full_att"], params["b_full_att"],
      params["W_f_beta"], params["b_f_beta"],
      W_ih_e, W_ih_a, params["W_hh"], b_gates,
      params["W_fc"], params["b_fc"])

  predictions = jnp.transpose(preds_tbv, (1, 0, 2))                   # (B, T, V)
  alphas = jnp.transpose(alphas_tp1.reshape(T, B, P), (1, 0, 2))      # (B, T, P)
  return predictions, caps, decode_lengths, alphas, sort_ind


# -----------------------------------------------------------------------------
if __name__ == "__main__":
  key = jax.random.PRNGKey(0)
  attention_dim, embed_dim, decoder_dim = 32, 32, 32
  vocab_size, encoder_dim = 64, 64
  B, enc_size, L = 4, 4, 8                     # num_pixels = 16

  k1, k2, kp = jax.random.split(key, 3)
  encoder_out = jax.random.normal(k1, (B, enc_size, enc_size, encoder_dim), jnp.float32)
  encoded_captions = jax.random.randint(k2, (B, L), 0, vocab_size)
  caption_lengths = jnp.array([[8], [5], [7], [3]], dtype=jnp.int32)

  params = init_params(kp, attention_dim, embed_dim, decoder_dim, vocab_size, encoder_dim)

  preds, caps, decode_lengths, alphas, sort_ind = decoder_forward(
      params, encoder_out, encoded_captions, caption_lengths)
  jax.block_until_ready((preds, caps, alphas, sort_ind))

  assert preds.shape == (B, max(decode_lengths), vocab_size)
  assert alphas.shape == (B, max(decode_lengths), enc_size * enc_size)
  print("KERNEL_OK")
</pallas_src>

<mosaic_0001>
module attributes {stable_mosaic.version = 11 : i64} {
  func.func @_decoder_kernel(%arg0: i32, %arg1: memref<4x1xi32, #tpu.memory_space<vmem>>, %arg2: memref<64x4xf32, #tpu.memory_space<vmem>>, %arg3: memref<4x64xf32, #tpu.memory_space<vmem>>, %arg4: memref<64x64xf32, #tpu.memory_space<vmem>>, %arg5: memref<4x32xf32, #tpu.memory_space<vmem>>, %arg6: memref<4x32xf32, #tpu.memory_space<vmem>>, %arg7: memref<1x4x32xf32, #tpu.memory_space<vmem>>, %arg8: memref<64x32xf32, #tpu.memory_space<vmem>>, %arg9: memref<1x32xf32, #tpu.memory_space<vmem>>, %arg10: memref<32x32xf32, #tpu.memory_space<vmem>>, %arg11: memref<1x32xf32, #tpu.memory_space<vmem>>, %arg12: memref<32x1xf32, #tpu.memory_space<vmem>>, %arg13: memref<1x1xf32, #tpu.memory_space<vmem>>, %arg14: memref<32x64xf32, #tpu.memory_space<vmem>>, %arg15: memref<1x64xf32, #tpu.memory_space<vmem>>, %arg16: memref<32x128xf32, #tpu.memory_space<vmem>>, %arg17: memref<64x128xf32, #tpu.memory_space<vmem>>, %arg18: memref<32x128xf32, #tpu.memory_space<vmem>>, %arg19: memref<1x128xf32, #tpu.memory_space<vmem>>, %arg20: memref<32x64xf32, #tpu.memory_space<vmem>>, %arg21: memref<1x64xf32, #tpu.memory_space<vmem>>, %arg22: memref<1x4x64xf32, #tpu.memory_space<vmem>>, %arg23: memref<1x64x1xf32, #tpu.memory_space<vmem>>, %arg24: memref<4x32xf32, #tpu.memory_space<vmem>>, %arg25: memref<4x32xf32, #tpu.memory_space<vmem>>) attributes {dimension_semantics = [#tpu.dimension_semantics<arbitrary>], iteration_bounds = array<i64: 7>, scalar_prefetch = 0 : i64, scratch_operands = 2 : i64, tpu.core_type = #tpu.core_type<tc>, window_params = [{pipeline_mode = #tpu.pipeline_mode<synchronous>, transform_indices = @transform_0, window_bounds = array<i64: 4, 1>}, {pipeline_mode = #tpu.pipeline_mode<synchronous>, transform_indices = @transform_1, window_bounds = array<i64: 64, 4>}, {pipeline_mode = #tpu.pipeline_mode<synchronous>, transform_indices = @transform_2, window_bounds = array<i64: 4, 64>}, {pipeline_mode = #tpu.pipeline_mode<synchronous>, transform_indices = @transform_3, window_bounds = array<i64: 64, 64>}, {pipeline_mode = #tpu.pipeline_mode<synchronous>, transform_indices = @transform_4, window_bounds = array<i64: 4, 32>}, {pipeline_mode = #tpu.pipeline_mode<synchronous>, transform_indices = @transform_5, window_bounds = array<i64: 4, 32>}, {transform_indices = @transform_6, window_bounds = array<i64: 1, 4, 32>}, {pipeline_mode = #tpu.pipeline_mode<synchronous>, transform_indices = @transform_7, window_bounds = array<i64: 64, 32>}, {pipeline_mode = #tpu.pipeline_mode<synchronous>, transform_indices = @transform_8, window_bounds = array<i64: 1, 32>}, {pipeline_mode = #tpu.pipeline_mode<synchronous>, transform_indices = @transform_9, window_bounds = array<i64: 32, 32>}, {pipeline_mode = #tpu.pipeline_mode<synchronous>, transform_indices = @transform_10, window_bounds = array<i64: 1, 32>}, {pipeline_mode = #tpu.pipeline_mode<synchronous>, transform_indices = @transform_11, window_bounds = array<i64: 32, 1>}, {pipeline_mode = #tpu.pipeline_mode<synchronous>, transform_indices = @transform_12, window_bounds = array<i64: 1, 1>}, {pipeline_mode = #tpu.pipeline_mode<synchronous>, transform_indices = @transform_13, window_bounds = array<i64: 32, 64>}, {pipeline_mode = #tpu.pipeline_mode<synchronous>, transform_indices = @transform_14, window_bounds = array<i64: 1, 64>}, {pipeline_mode = #tpu.pipeline_mode<synchronous>, transform_indices = @transform_15, window_bounds = array<i64: 32, 128>}, {pipeline_mode = #tpu.pipeline_mode<synchronous>, transform_indices = @transform_16, window_bounds = array<i64: 64, 128>}, {pipeline_mode = #tpu.pipeline_mode<synchronous>, transform_indices = @transform_17, window_bounds = array<i64: 32, 128>}, {pipeline_mode = #tpu.pipeline_mode<synchronous>, transform_indices = @transform_18, window_bounds = array<i64: 1, 128>}, {pipeline_mode = #tpu.pipeline_mode<synchronous>, transform_indices = @transform_19, window_bounds = array<i64: 32, 64>}, {pipeline_mode = #tpu.pipeline_mode<synchronous>, transform_indices = @transform_20, window_bounds = array<i64: 1, 64>}, {transform_indices = @transform_21, window_bounds = array<i64: 1, 4, 64>}, {transform_indices = @transform_22, window_bounds = array<i64: 1, 64, 1>}]} {
    %c0_i32 = arith.constant 0 : i32
    %0 = arith.cmpi eq, %arg0, %c0_i32 : i32
    %1 = arith.extui %0 : i1 to i32
    %c0_i32_0 = arith.constant 0 : i32
    %2 = arith.cmpi ne, %1, %c0_i32_0 : i32
    scf.if %2 {
      %c0_77 = arith.constant 0 : index
      %c0_78 = arith.constant 0 : index
      %152 = vector.load %arg5[%c0_77, %c0_78] : memref<4x32xf32, #tpu.memory_space<vmem>>, vector<4x32xf32>
      %c0_79 = arith.constant 0 : index
      %c0_80 = arith.constant 0 : index
      %153 = vector.load %arg24[%c0_79, %c0_80] : memref<4x32xf32, #tpu.memory_space<vmem>>, vector<4x32xf32>
      tpu.vector_store %arg24[%c0_79, %c0_80], %152 {strides = array<i32>} : memref<4x32xf32, #tpu.memory_space<vmem>>, vector<4x32xf32>,
      %c0_81 = arith.constant 0 : index
      %c0_82 = arith.constant 0 : index
      %154 = vector.load %arg6[%c0_81, %c0_82] : memref<4x32xf32, #tpu.memory_space<vmem>>, vector<4x32xf32>
      %c0_83 = arith.constant 0 : index
      %c0_84 = arith.constant 0 : index
      %155 = vector.load %arg25[%c0_83, %c0_84] : memref<4x32xf32, #tpu.memory_space<vmem>>, vector<4x32xf32>
      tpu.vector_store %arg25[%c0_83, %c0_84], %154 {strides = array<i32>} : memref<4x32xf32, #tpu.memory_space<vmem>>, vector<4x32xf32>,
    } else {
    }
    %c0 = arith.constant 0 : index
    %c0_1 = arith.constant 0 : index
    %3 = vector.load %arg24[%c0, %c0_1] : memref<4x32xf32, #tpu.memory_space<vmem>>, vector<4x32xf32>
    %c0_2 = arith.constant 0 : index
    %c0_3 = arith.constant 0 : index
    %4 = vector.load %arg25[%c0_2, %c0_3] : memref<4x32xf32, #tpu.memory_space<vmem>>, vector<4x32xf32>
    %c0_4 = arith.constant 0 : index
    %c0_5 = arith.constant 0 : index
    %c0_6 = arith.constant 0 : index
    %5 = vector.load %arg7[%c0_4, %c0_5, %c0_6] : memref<1x4x32xf32, #tpu.memory_space<vmem>>, vector<1x4x32xf32>
    %6 = vector.shape_cast %5 : vector<1x4x32xf32> to vector<4x32xf32>
    %c0_7 = arith.constant 0 : index
    %c0_8 = arith.constant 0 : index
    %7 = vector.load %arg4[%c0_7, %c0_8] : memref<64x64xf32, #tpu.memory_space<vmem>>, vector<64x64xf32>
    %c0_9 = arith.constant 0 : index
    %c0_10 = arith.constant 0 : index
    %8 = vector.load %arg2[%c0_9, %c0_10] : memref<64x4xf32, #tpu.memory_space<vmem>>, vector<64x4xf32>
    %c0_11 = arith.constant 0 : index
    %c0_12 = arith.constant 0 : index
    %9 = vector.load %arg3[%c0_11, %c0_12] : memref<4x64xf32, #tpu.memory_space<vmem>>, vector<4x64xf32>
    %c0_13 = arith.constant 0 : index
    %c0_14 = arith.constant 0 : index
    %10 = vector.load %arg8[%c0_13, %c0_14] : memref<64x32xf32, #tpu.memory_space<vmem>>, vector<64x32xf32>
    %cst = arith.constant dense<0.000000e+00> : vector<64x32xf32>
    %11 = tpu.matmul %7, %10, %cst {dimension_numbers = #tpu.dot_dimension_numbers<[1], [0], [0], [1], [0, 0, 1, 1], [], []>} : vector<64x64xf32>, vector<64x32xf32>, vector<64x32xf32> -> vector<64x32xf32>
    %c0_15 = arith.constant 0 : index
    %c0_16 = arith.constant 0 : index
    %12 = vector.load %arg9[%c0_15, %c0_16] : memref<1x32xf32, #tpu.memory_space<vmem>>, vector<1x32xf32>
    %13 = vector.broadcast %12 : vector<1x32xf32> to vector<64x32xf32>
    %14 = arith.addf %11, %13 : vector<64x32xf32>
    %c0_17 = arith.constant 0 : index
    %c0_18 = arith.constant 0 : index
    %15 = vector.load %arg10[%c0_17, %c0_18] : memref<32x32xf32, #tpu.memory_space<vmem>>, vector<32x32xf32>
    %cst_19 = arith.constant dense<0.000000e+00> : vector<4x32xf32>
    %16 = tpu.matmul %3, %15, %cst_19 {dimension_numbers = #tpu.dot_dimension_numbers<[1], [0], [0], [1], [0, 0, 1, 1], [], []>} : vector<4x32xf32>, vector<32x32xf32>, vector<4x32xf32> -> vector<4x32xf32>
    %c0_20 = arith.constant 0 : index
    %c0_21 = arith.constant 0 : index
    %17 = vector.load %arg11[%c0_20, %c0_21] : memref<1x32xf32, #tpu.memory_space<vmem>>, vector<1x32xf32>
    %18 = vector.broadcast %17 : vector<1x32xf32> to vector<4x32xf32>
    %19 = arith.addf %16, %18 : vector<4x32xf32>
    %cst_22 = arith.constant dense<0.000000e+00> : vector<64x32xf32>
    %20 = tpu.matmul %8, %19, %cst_22 {dimension_numbers = #tpu.dot_dimension_numbers<[1], [0], [0], [1], [0, 0, 1, 1], [], []>} : vector<64x4xf32>, vector<4x32xf32>, vector<64x32xf32> -> vector<64x32xf32>
    %21 = arith.addf %14, %20 : vector<64x32xf32>
    %cst_23 = arith.constant 0.000000e+00 : f32
    %22 = vector.broadcast %cst_23 : f32 to vector<64x32xf32>
    %23 = arith.maximumf %21, %22 : vector<64x32xf32>
    %c0_24 = arith.constant 0 : index
    %c0_25 = arith.constant 0 : index
    %24 = vector.load %arg12[%c0_24, %c0_25] : memref<32x1xf32, #tpu.memory_space<vmem>>, vector<32x1xf32>
    %cst_26 = arith.constant dense<0.000000e+00> : vector<64x1xf32>
    %25 = tpu.matmul %23, %24, %cst_26 {dimension_numbers = #tpu.dot_dimension_numbers<[1], [0], [0], [1], [0, 0, 1, 1], [], []>} : vector<64x32xf32>, vector<32x1xf32>, vector<64x1xf32> -> vector<64x1xf32>
    %c0_27 = arith.constant 0 : index
    %c0_28 = arith.constant 0 : index
    %26 = vector.load %arg13[%c0_27, %c0_28] : memref<1x1xf32, #tpu.memory_space<vmem>>, vector<1x1xf32>
    %27 = vector.broadcast %26 : vector<1x1xf32> to vector<64x1xf32>
    %28 = arith.addf %25, %27 : vector<64x1xf32>
    %cst_29 = arith.constant 0.000000e+00 : f32
    %29 = vector.broadcast %cst_29 : f32 to vector<64x1xf32>
    %30 = vector.extract_strided_slice %28 {offsets = [0, 0], sizes = [16, 1], strides = [1, 1]} : vector<64x1xf32> to vector<16x1xf32>
    %cst_30 = arith.constant dense<0xFF800000> : vector<1xf32>
    %31 = vector.multi_reduction <maximumf>, %30, %cst_30 [0] : vector<16x1xf32> to vector<1xf32>
    %32 = vector.shape_cast %31 : vector<1xf32> to vector<1x1xf32>
    %33 = vector.extract_strided_slice %8 {offsets = [0, 0], sizes = [64, 1], strides = [1, 1]} : vector<64x4xf32> to vector<64x1xf32>
    %34 = vector.broadcast %32 : vector<1x1xf32> to vector<64x1xf32>
    %35 = arith.mulf %33, %34 : vector<64x1xf32>
    %36 = arith.addf %29, %35 : vector<64x1xf32>
    %37 = vector.extract_strided_slice %28 {offsets = [16, 0], sizes = [16, 1], strides = [1, 1]} : vector<64x1xf32> to vector<16x1xf32>
    %cst_31 = arith.constant dense<0xFF800000> : vector<1xf32>
    %38 = vector.multi_reduction <maximumf>, %37, %cst_31 [0] : vector<16x1xf32> to vector<1xf32>
    %39 = vector.shape_cast %38 : vector<1xf32> to vector<1x1xf32>
    %40 = vector.extract_strided_slice %8 {offsets = [0, 1], sizes = [64, 1], strides = [1, 1]} : vector<64x4xf32> to vector<64x1xf32>
    %41 = vector.broadcast %39 : vector<1x1xf32> to vector<64x1xf32>
    %42 = arith.mulf %40, %41 : vector<64x1xf32>
    %43 = arith.addf %36, %42 : vector<64x1xf32>
    %44 = vector.extract_strided_slice %28 {offsets = [32, 0], sizes = [16, 1], strides = [1, 1]} : vector<64x1xf32> to vector<16x1xf32>
    %cst_32 = arith.constant dense<0xFF800000> : vector<1xf32>
    %45 = vector.multi_reduction <maximumf>, %44, %cst_32 [0] : vector<16x1xf32> to vector<1xf32>
    %46 = vector.shape_cast %45 : vector<1xf32> to vector<1x1xf32>
    %47 = vector.extract_strided_slice %8 {offsets = [0, 2], sizes = [64, 1], strides = [1, 1]} : vector<64x4xf32> to vector<64x1xf32>
    %48 = vector.broadcast %46 : vector<1x1xf32> to vector<64x1xf32>
    %49 = arith.mulf %47, %48 : vector<64x1xf32>
    %50 = arith.addf %43, %49 : vector<64x1xf32>
    %51 = vector.extract_strided_slice %28 {offsets = [48, 0], sizes = [16, 1], strides = [1, 1]} : vector<64x1xf32> to vector<16x1xf32>
    %cst_33 = arith.constant dense<0xFF800000> : vector<1xf32>
    %52 = vector.multi_reduction <maximumf>, %51, %cst_33 [0] : vector<16x1xf32> to vector<1xf32>
    %53 = vector.shape_cast %52 : vector<1xf32> to vector<1x1xf32>
    %54 = vector.extract_strided_slice %8 {offsets = [0, 3], sizes = [64, 1], strides = [1, 1]} : vector<64x4xf32> to vector<64x1xf32>
    %55 = vector.broadcast %53 : vector<1x1xf32> to vector<64x1xf32>
    %56 = arith.mulf %54, %55 : vector<64x1xf32>
    %57 = arith.addf %50, %56 : vector<64x1xf32>
    %58 = arith.subf %28, %57 : vector<64x1xf32>
    %59 = math.exp %58 : vector<64x1xf32>
    %cst_34 = arith.constant dense<0.000000e+00> : vector<4x1xf32>
    %60 = tpu.matmul %9, %59, %cst_34 {dimension_numbers = #tpu.dot_dimension_numbers<[1], [0], [0], [1], [0, 0, 1, 1], [], []>} : vector<4x64xf32>, vector<64x1xf32>, vector<4x1xf32> -> vector<4x1xf32>
    %61 = tpu.reciprocal %60 {approx = true} : vector<4x1xf32> -> vector<4x1xf32>
    %cst_35 = arith.constant dense<0.000000e+00> : vector<64x1xf32>
    %62 = tpu.matmul %8, %61, %cst_35 {dimension_numbers = #tpu.dot_dimension_numbers<[1], [0], [0], [1], [0, 0, 1, 1], [], []>} : vector<64x4xf32>, vector<4x1xf32>, vector<64x1xf32> -> vector<64x1xf32>
    %63 = arith.mulf %59, %62 : vector<64x1xf32>
    %64 = vector.broadcast %63 : vector<64x1xf32> to vector<64x64xf32>
    %65 = arith.mulf %7, %64 : vector<64x64xf32>
    %cst_36 = arith.constant dense<0.000000e+00> : vector<4x64xf32>
    %66 = tpu.matmul %9, %65, %cst_36 {dimension_numbers = #tpu.dot_dimension_numbers<[1], [0], [0], [1], [0, 0, 1, 1], [], []>} : vector<4x64xf32>, vector<64x64xf32>, vector<4x64xf32> -> vector<4x64xf32>
    %c0_37 = arith.constant 0 : index
    %c0_38 = arith.constant 0 : index
    %67 = vector.load %arg14[%c0_37, %c0_38] : memref<32x64xf32, #tpu.memory_space<vmem>>, vector<32x64xf32>
    %cst_39 = arith.constant dense<0.000000e+00> : vector<4x64xf32>
    %68 = tpu.matmul %3, %67, %cst_39 {dimension_numbers = #tpu.dot_dimension_numbers<[1], [0], [0], [1], [0, 0, 1, 1], [], []>} : vector<4x32xf32>, vector<32x64xf32>, vector<4x64xf32> -> vector<4x64xf32>
    %c0_40 = arith.constant 0 : index
    %c0_41 = arith.constant 0 : index
    %69 = vector.load %arg15[%c0_40, %c0_41] : memref<1x64xf32, #tpu.memory_space<vmem>>, vector<1x64xf32>
    %70 = vector.broadcast %69 : vector<1x64xf32> to vector<4x64xf32>
    %71 = arith.addf %68, %70 : vector<4x64xf32>
    %72 = arith.negf %71 : vector<4x64xf32>
    %73 = math.exp %72 : vector<4x64xf32>
    %cst_42 = arith.constant 1.000000e+00 : f32
    %74 = vector.broadcast %cst_42 : f32 to vector<4x64xf32>
    %75 = arith.addf %74, %73 : vector<4x64xf32>
    %76 = arith.divf %74, %75 : vector<4x64xf32>
    %77 = arith.mulf %76, %66 : vector<4x64xf32>
    %c0_43 = arith.constant 0 : index
    %c0_44 = arith.constant 0 : index
    %78 = vector.load %arg16[%c0_43, %c0_44] : memref<32x128xf32, #tpu.memory_space<vmem>>, vector<32x128xf32>
    %cst_45 = arith.constant dense<0.000000e+00> : vector<4x128xf32>
    %79 = tpu.matmul %6, %78, %cst_45 {dimension_numbers = #tpu.dot_dimension_numbers<[1], [0], [0], [1], [0, 0, 1, 1], [], []>} : vector<4x32xf32>, vector<32x128xf32>, vector<4x128xf32> -> vector<4x128xf32>
    %c0_46 = arith.constant 0 : index
    %c0_47 = arith.constant 0 : index
    %80 = vector.load %arg17[%c0_46, %c0_47] : memref<64x128xf32, #tpu.memory_space<vmem>>, vector<64x128xf32>
    %cst_48 = arith.constant dense<0.000000e+00> : vector<4x128xf32>
    %81 = tpu.matmul %77, %80, %cst_48 {dimension_numbers = #tpu.dot_dimension_numbers<[1], [0], [0], [1], [0, 0, 1, 1], [], []>} : vector<4x64xf32>, vector<64x128xf32>, vector<4x128xf32> -> vector<4x128xf32>
    %82 = arith.addf %79, %81 : vector<4x128xf32>
    %c0_49 = arith.constant 0 : index
    %c0_50 = arith.constant 0 : index
    %83 = vector.load %arg18[%c0_49, %c0_50] : memref<32x128xf32, #tpu.memory_space<vmem>>, vector<32x128xf32>
    %cst_51 = arith.constant dense<0.000000e+00> : vector<4x128xf32>
    %84 = tpu.matmul %3, %83, %cst_51 {dimension_numbers = #tpu.dot_dimension_numbers<[1], [0], [0], [1], [0, 0, 1, 1], [], []>} : vector<4x32xf32>, vector<32x128xf32>, vector<4x128xf32> -> vector<4x128xf32>
    %85 = arith.addf %82, %84 : vector<4x128xf32>
    %c0_52 = arith.constant 0 : index
    %c0_53 = arith.constant 0 : index
    %86 = vector.load %arg19[%c0_52, %c0_53] : memref<1x128xf32, #tpu.memory_space<vmem>>, vector<1x128xf32>
    %87 = vector.broadcast %86 : vector<1x128xf32> to vector<4x128xf32>
    %88 = arith.addf %85, %87 : vector<4x128xf32>
    %89 = vector.extract_strided_slice %88 {offsets = [0, 0], sizes = [4, 32], strides = [1, 1]} : vector<4x128xf32> to vector<4x32xf32>
    %90 = arith.negf %89 : vector<4x32xf32>
    %91 = math.exp %90 : vector<4x32xf32>
    %cst_54 = arith.constant 1.000000e+00 : f32
    %92 = vector.broadcast %cst_54 : f32 to vector<4x32xf32>
    %93 = arith.addf %92, %91 : vector<4x32xf32>
    %94 = arith.divf %92, %93 : vector<4x32xf32>
    %95 = vector.extract_strided_slice %88 {offsets = [0, 32], sizes = [4, 32], strides = [1, 1]} : vector<4x128xf32> to vector<4x32xf32>
    %96 = arith.negf %95 : vector<4x32xf32>
    %97 = math.exp %96 : vector<4x32xf32>
    %cst_55 = arith.constant 1.000000e+00 : f32
    %98 = vector.broadcast %cst_55 : f32 to vector<4x32xf32>
    %99 = arith.addf %98, %97 : vector<4x32xf32>
    %100 = arith.divf %98, %99 : vector<4x32xf32>
    %101 = vector.extract_strided_slice %88 {offsets = [0, 64], sizes = [4, 32], strides = [1, 1]} : vector<4x128xf32> to vector<4x32xf32>
    %102 = math.tanh %101 : vector<4x32xf32>
    %103 = vector.extract_strided_slice %88 {offsets = [0, 96], sizes = [4, 32], strides = [1, 1]} : vector<4x128xf32> to vector<4x32xf32>
    %104 = arith.negf %103 : vector<4x32xf32>
    %105 = math.exp %104 : vector<4x32xf32>
    %cst_56 = arith.constant 1.000000e+00 : f32
    %106 = vector.broadcast %cst_56 : f32 to vector<4x32xf32>
    %107 = arith.addf %106, %105 : vector<4x32xf32>
    %108 = arith.divf %106, %107 : vector<4x32xf32>
    %109 = arith.mulf %100, %4 : vector<4x32xf32>
    %110 = arith.mulf %94, %102 : vector<4x32xf32>
    %111 = arith.addf %109, %110 : vector<4x32xf32>
    %112 = math.tanh %111 : vector<4x32xf32>
    %113 = arith.mulf %108, %112 : vector<4x32xf32>
    %c0_57 = arith.constant 0 : index
    %c0_58 = arith.constant 0 : index
    %114 = vector.load %arg20[%c0_57, %c0_58] : memref<32x64xf32, #tpu.memory_space<vmem>>, vector<32x64xf32>
    %cst_59 = arith.constant dense<0.000000e+00> : vector<4x64xf32>
    %115 = tpu.matmul %113, %114, %cst_59 {dimension_numbers = #tpu.dot_dimension_numbers<[1], [0], [0], [1], [0, 0, 1, 1], [], []>} : vector<4x32xf32>, vector<32x64xf32>, vector<4x64xf32> -> vector<4x64xf32>
    %c0_60 = arith.constant 0 : index
    %c0_61 = arith.constant 0 : index
    %116 = vector.load %arg21[%c0_60, %c0_61] : memref<1x64xf32, #tpu.memory_space<vmem>>, vector<1x64xf32>
    %117 = vector.broadcast %116 : vector<1x64xf32> to vector<4x64xf32>
    %118 = arith.addf %115, %117 : vector<4x64xf32>
    %cst_62 = arith.constant dense<0xFF800000> : vector<4xf32>
    %119 = vector.multi_reduction <maximumf>, %118, %cst_62 [1] : vector<4x64xf32> to vector<4xf32>
    %120 = vector.shape_cast %119 : vector<4xf32> to vector<4x1xf32>
    %121 = vector.broadcast %120 : vector<4x1xf32> to vector<4x64xf32>
    %122 = arith.subf %118, %121 : vector<4x64xf32>
    %123 = math.exp %122 : vector<4x64xf32>
    %cst_63 = arith.constant dense<0.000000e+00> : vector<4xf32>
    %124 = vector.multi_reduction <add>, %123, %cst_63 [1] : vector<4x64xf32> to vector<4xf32>
    %125 = vector.shape_cast %124 : vector<4xf32> to vector<4x1xf32>
    %126 = tpu.reciprocal %125 {approx = true} : vector<4x1xf32> -> vector<4x1xf32>
    %127 = vector.broadcast %126 : vector<4x1xf32> to vector<4x64xf32>
    %128 = arith.mulf %123, %127 : vector<4x64xf32>
    %c0_64 = arith.constant 0 : index
    %c0_65 = arith.constant 0 : index
    %129 = vector.load %arg1[%c0_64, %c0_65] : memref<4x1xi32, #tpu.memory_space<vmem>>, vector<4x1xi32>
    %130 = vector.broadcast %arg0 : i32 to vector<4x1xi32>
    %131 = arith.cmpi sgt, %129, %130 : vector<4x1xi32>
    %132 = arith.extui %131 : vector<4x1xi1> to vector<4x1xi32>
    %133 = arith.sitofp %132 : vector<4x1xi32> to vector<4x1xf32>
    %cst_66 = arith.constant dense<0.000000e+00> : vector<64x1xf32>
    %134 = tpu.matmul %8, %133, %cst_66 {dimension_numbers = #tpu.dot_dimension_numbers<[1], [0], [0], [1], [0, 0, 1, 1], [], []>} : vector<64x4xf32>, vector<4x1xf32>, vector<64x1xf32> -> vector<64x1xf32>
    %135 = vector.broadcast %133 : vector<4x1xf32> to vector<4x64xf32>
    %136 = arith.mulf %128, %135 : vector<4x64xf32>
    %c0_67 = arith.constant 0 : index
    %c0_68 = arith.constant 0 : index
    %c0_69 = arith.constant 0 : index
    %137 = vector.load %arg22[%c0_67, %c0_68, %c0_69] : memref<1x4x64xf32, #tpu.memory_space<vmem>>, vector<1x4x64xf32>
    %138 = vector.shape_cast %137 : vector<1x4x64xf32> to vector<4x64xf32>
    %139 = vector.shape_cast %136 : vector<4x64xf32> to vector<1x4x64xf32>
    tpu.vector_store %arg22[%c0_67, %c0_68, %c0_69], %139 {strides = array<i32>} : memref<1x4x64xf32, #tpu.memory_space<vmem>>, vector<1x4x64xf32>,
    %140 = arith.mulf %63, %134 : vector<64x1xf32>
    %c0_70 = arith.constant 0 : index
    %c0_71 = arith.constant 0 : index
    %c0_72 = arith.constant 0 : index
    %141 = vector.load %arg23[%c0_70, %c0_71, %c0_72] : memref<1x64x1xf32, #tpu.memory_space<vmem>>, vector<1x64x1xf32>
    %142 = vector.shape_cast %141 : vector<1x64x1xf32> to vector<64x1xf32>
    %143 = vector.shape_cast %140 : vector<64x1xf32> to vector<1x64x1xf32>
    tpu.vector_store %arg23[%c0_70, %c0_71, %c0_72], %143 {strides = array<i32>} : memref<1x64x1xf32, #tpu.memory_space<vmem>>, vector<1x64x1xf32>,
    %144 = vector.shape_cast %131 : vector<4x1xi1> to vector<4x1xi1>
    %145 = vector.broadcast %144 : vector<4x1xi1> to vector<4x32xi1>
    %146 = arith.select %145, %113, %3 : vector<4x32xi1>, vector<4x32xf32>
    %c0_73 = arith.constant 0 : index
    %c0_74 = arith.constant 0 : index
    %147 = vector.load %arg24[%c0_73, %c0_74] : memref<4x32xf32, #tpu.memory_space<vmem>>, vector<4x32xf32>
    tpu.vector_store %arg24[%c0_73, %c0_74], %146 {strides = array<i32>} : memref<4x32xf32, #tpu.memory_space<vmem>>, vector<4x32xf32>,
    %148 = vector.shape_cast %131 : vector<4x1xi1> to vector<4x1xi1>
    %149 = vector.broadcast %148 : vector<4x1xi1> to vector<4x32xi1>
    %150 = arith.select %149, %111, %4 : vector<4x32xi1>, vector<4x32xf32>
    %c0_75 = arith.constant 0 : index
    %c0_76 = arith.constant 0 : index
    %151 = vector.load %arg25[%c0_75, %c0_76] : memref<4x32xf32, #tpu.memory_space<vmem>>, vector<4x32xf32>
    tpu.vector_store %arg25[%c0_75, %c0_76], %150 {strides = array<i32>} : memref<4x32xf32, #tpu.memory_space<vmem>>, vector<4x32xf32>,
    return
  }
  func.func @transform_0(%arg0: i32) -> (i32, i32) {
    %c0_i32 = arith.constant 0 : i32
    %c0_i32_0 = arith.constant 0 : i32
    %c0_i32_1 = arith.constant 0 : i32
    return %c0_i32, %c0_i32_0 : i32, i32
  }
  func.func @transform_1(%arg0: i32) -> (i32, i32) {
    %c0_i32 = arith.constant 0 : i32
    %c0_i32_0 = arith.constant 0 : i32
    %c0_i32_1 = arith.constant 0 : i32
    return %c0_i32, %c0_i32_0 : i32, i32
  }
  func.func @transform_2(%arg0: i32) -> (i32, i32) {
    %c0_i32 = arith.constant 0 : i32
    %c0_i32_0 = arith.constant 0 : i32
    %c0_i32_1 = arith.constant 0 : i32
    return %c0_i32, %c0_i32_0 : i32, i32
  }
  func.func @transform_3(%arg0: i32) -> (i32, i32) {
    %c0_i32 = arith.constant 0 : i32
    %c0_i32_0 = arith.constant 0 : i32
    %c0_i32_1 = arith.constant 0 : i32
    return %c0_i32, %c0_i32_0 : i32, i32
  }
  func.func @transform_4(%arg0: i32) -> (i32, i32) {
    %c0_i32 = arith.constant 0 : i32
    %c0_i32_0 = arith.constant 0 : i32
    %c0_i32_1 = arith.constant 0 : i32
    return %c0_i32, %c0_i32_0 : i32, i32
  }
  func.func @transform_5(%arg0: i32) -> (i32, i32) {
    %c0_i32 = arith.constant 0 : i32
    %c0_i32_0 = arith.constant 0 : i32
    %c0_i32_1 = arith.constant 0 : i32
    return %c0_i32, %c0_i32_0 : i32, i32
  }
  func.func @transform_6(%arg0: i32) -> (i32, i32, i32) {
    %c0_i32 = arith.constant 0 : i32
    %c0_i32_0 = arith.constant 0 : i32
    %c0_i32_1 = arith.constant 0 : i32
    return %arg0, %c0_i32, %c0_i32_0 : i32, i32, i32
  }
  func.func @transform_7(%arg0: i32) -> (i32, i32) {
    %c0_i32 = arith.constant 0 : i32
    %c0_i32_0 = arith.constant 0 : i32
    %c0_i32_1 = arith.constant 0 : i32
    return %c0_i32, %c0_i32_0 : i32, i32
  }
  func.func @transform_8(%arg0: i32) -> (i32, i32) {
    %c0_i32 = arith.constant 0 : i32
    %c0_i32_0 = arith.constant 0 : i32
    %c0_i32_1 = arith.constant 0 : i32
    return %c0_i32, %c0_i32_0 : i32, i32
  }
  func.func @transform_9(%arg0: i32) -> (i32, i32) {
    %c0_i32 = arith.constant 0 : i32
    %c0_i32_0 = arith.constant 0 : i32
    %c0_i32_1 = arith.constant 0 : i32
    return %c0_i32, %c0_i32_0 : i32, i32
  }
  func.func @transform_10(%arg0: i32) -> (i32, i32) {
    %c0_i32 = arith.constant 0 : i32
    %c0_i32_0 = arith.constant 0 : i32
    %c0_i32_1 = arith.constant 0 : i32
    return %c0_i32, %c0_i32_0 : i32, i32
  }
  func.func @transform_11(%arg0: i32) -> (i32, i32) {
    %c0_i32 = arith.constant 0 : i32
    %c0_i32_0 = arith.constant 0 : i32
    %c0_i32_1 = arith.constant 0 : i32
    return %c0_i32, %c0_i32_0 : i32, i32
  }
  func.func @transform_12(%arg0: i32) -> (i32, i32) {
    %c0_i32 = arith.constant 0 : i32
    %c0_i32_0 = arith.constant 0 : i32
    %c0_i32_1 = arith.constant 0 : i32
    return %c0_i32, %c0_i32_0 : i32, i32
  }
  func.func @transform_13(%arg0: i32) -> (i32, i32) {
    %c0_i32 = arith.constant 0 : i32
    %c0_i32_0 = arith.constant 0 : i32
    %c0_i32_1 = arith.constant 0 : i32
    return %c0_i32, %c0_i32_0 : i32, i32
  }
  func.func @transform_14(%arg0: i32) -> (i32, i32) {
    %c0_i32 = arith.constant 0 : i32
    %c0_i32_0 = arith.constant 0 : i32
    %c0_i32_1 = arith.constant 0 : i32
    return %c0_i32, %c0_i32_0 : i32, i32
  }
  func.func @transform_15(%arg0: i32) -> (i32, i32) {
    %c0_i32 = arith.constant 0 : i32
    %c0_i32_0 = arith.constant 0 : i32
    %c0_i32_1 = arith.constant 0 : i32
    return %c0_i32, %c0_i32_0 : i32, i32
  }
  func.func @transform_16(%arg0: i32) -> (i32, i32) {
    %c0_i32 = arith.constant 0 : i32
    %c0_i32_0 = arith.constant 0 : i32
    %c0_i32_1 = arith.constant 0 : i32
    return %c0_i32, %c0_i32_0 : i32, i32
  }
  func.func @transform_17(%arg0: i32) -> (i32, i32) {
    %c0_i32 = arith.constant 0 : i32
    %c0_i32_0 = arith.constant 0 : i32
    %c0_i32_1 = arith.constant 0 : i32
    return %c0_i32, %c0_i32_0 : i32, i32
  }
  func.func @transform_18(%arg0: i32) -> (i32, i32) {
    %c0_i32 = arith.constant 0 : i32
    %c0_i32_0 = arith.constant 0 : i32
    %c0_i32_1 = arith.constant 0 : i32
    return %c0_i32, %c0_i32_0 : i32, i32
  }
  func.func @transform_19(%arg0: i32) -> (i32, i32) {
    %c0_i32 = arith.constant 0 : i32
    %c0_i32_0 = arith.constant 0 : i32
    %c0_i32_1 = arith.constant 0 : i32
    return %c0_i32, %c0_i32_0 : i32, i32
  }
  func.func @transform_20(%arg0: i32) -> (i32, i32) {
    %c0_i32 = arith.constant 0 : i32
    %c0_i32_0 = arith.constant 0 : i32
    %c0_i32_1 = arith.constant 0 : i32
    return %c0_i32, %c0_i32_0 : i32, i32
  }
  func.func @transform_21(%arg0: i32) -> (i32, i32, i32) {
    %c0_i32 = arith.constant 0 : i32
    %c0_i32_0 = arith.constant 0 : i32
    %c0_i32_1 = arith.constant 0 : i32
    return %arg0, %c0_i32, %c0_i32_0 : i32, i32, i32
  }
  func.func @transform_22(%arg0: i32) -> (i32, i32, i32) {
    %c0_i32 = arith.constant 0 : i32
    %c0_i32_0 = arith.constant 0 : i32
    %c0_i32_1 = arith.constant 0 : i32
    return %arg0, %c0_i32, %c0_i32_0 : i32, i32, i32
  }
}

</mosaic_0001>

<llo_original>
// kernel: tpu_custom_call.1
$region0: #{tpu_custom_call.1}
  #allocation0 [shape = 'u32[]', space=smem, size = 0x4, offset = 0x4, fixed_abs, tag = 'smem constant byte address 0x4 - core index']
  #allocation1 [shape = 'u32[144,128]{1,0:T(1,128)}', space=vmem, size = 0x12000, scoped, tag = 'internal scratch']
  #allocation2 [shape = 'f32[4,32]{1,0:T(4,128)}', space=vmem, size = 0x800, scoped, tag = 'scratch operand']
  #allocation3 [shape = 'f32[4,32]{1,0:T(4,128)}', space=vmem, size = 0x800, scoped, tag = 'scratch operand']
  #allocation4 [shape = 'f32[1,1]{1,0:T(1,128)S(1)}', space=vmem, size = 0x200, scoped, tag = 'scoped memory for tpu_custom_call.1']
  %s0 = inlined_call_operand.vmem [shape: s32[4,1], index: 0, kind: input, shape index: {}]
  %s1 = inlined_call_operand.vmem [shape: f32[64,4], index: 1, kind: input, shape index: {}]
  %s2 = inlined_call_operand.hbm [shape: f32[4,64], index: 2, kind: input, shape index: {}]
  %s3 = inlined_call_operand.vmem [shape: f32[64,64], index: 3, kind: input, shape index: {}]
  %s4 = inlined_call_operand.hbm [shape: f32[4,32], index: 4, kind: input, shape index: {}]
  %s5 = inlined_call_operand.hbm [shape: f32[4,32], index: 5, kind: input, shape index: {}]
  %s6 = inlined_call_operand.hbm [shape: f32[7,4,32], index: 6, kind: input, shape index: {}]
  %s7 = inlined_call_operand.vmem [shape: f32[64,32], index: 7, kind: input, shape index: {}]
  %s8 = inlined_call_operand.vmem [shape: f32[1,32], index: 8, kind: input, shape index: {}]
  %s9 = inlined_call_operand.vmem [shape: f32[32,32], index: 9, kind: input, shape index: {}]
  %s10 = inlined_call_operand.vmem [shape: f32[1,32], index: 10, kind: input, shape index: {}]
  %s11 = inlined_call_operand.vmem [shape: f32[32,1], index: 11, kind: input, shape index: {}]
  %s12 = inlined_call_operand.<no memory space> [shape: f32[1,1], index: 12, kind: input, shape index: {}]
  %s13 = inlined_call_operand.vmem [shape: f32[32,64], index: 13, kind: input, shape index: {}]
  %s14 = inlined_call_operand.hbm [shape: f32[1,64], index: 14, kind: input, shape index: {}]
  %s15 = inlined_call_operand.vmem [shape: f32[32,128], index: 15, kind: input, shape index: {}]
  %s16 = inlined_call_operand.vmem [shape: f32[64,128], index: 16, kind: input, shape index: {}]
  %s17 = inlined_call_operand.hbm [shape: f32[32,128], index: 17, kind: input, shape index: {}]
  %s18 = inlined_call_operand.vmem [shape: f32[1,128], index: 18, kind: input, shape index: {}]
  %s19 = inlined_call_operand.hbm [shape: f32[32,64], index: 19, kind: input, shape index: {}]
  %s20 = inlined_call_operand.vmem [shape: f32[1,64], index: 20, kind: input, shape index: {}]
  %s21 = inlined_call_operand.hbm [shape: f32[7,4,64], index: 21, kind: output, shape index: {0}]
  %s22 = inlined_call_operand.vmem [shape: f32[7,64,1], index: 22, kind: output, shape index: {1}]
  %23 = xla_tuple %s21, %s22
  %s24 = sld [smem:[#allocation0]]
  $region157: #{tpu_custom_call.1} parent=0
    _
  %s26 = ssub.s32 1, %s24
  %s27 = scalar_select 0, %s26, %s24
  %v28 = vstv %s12
  %29 = vst [vmem:[#allocation4] sm:$0x1] %v28
  $region1: #{tpu_custom_call.1} parent=0
    #allocation5 [shape = 'u8[2048]{0}', space=vmem, size = 0x800, scoped, tag = 'input window, operand 2, single buffered']
    #allocation6 [shape = 's32[2]{0}', space=sflag, size = 0x8, scoped, tag = 'scoped memory for tpu_custom_call.1']
    #allocation7 [shape = 's32[2]{0}', space=sflag, size = 0x8, scoped, tag = 'scoped memory for tpu_custom_call.1']
    #allocation8 [shape = 'u8[2048]{0}', space=vmem, size = 0x800, scoped, tag = 'input window, operand 4, single buffered']
    #allocation9 [shape = 's32[1]{0}', space=sflag, size = 0x4, scoped, tag = 'scoped memory for tpu_custom_call.1']
    #allocation10 [shape = 'u8[2048]{0}', space=vmem, size = 0x800, scoped, tag = 'input window, operand 5, single buffered']
    #allocation11 [shape = 'u8[4096]{0}', space=vmem, size = 0x1000, scoped, tag = 'input window, operand 6']
    #allocation12 [shape = 's32[2]{0}', space=sflag, size = 0x8, scoped, tag = 'scoped memory for tpu_custom_call.1']
    #allocation13 [shape = 'u8[512]{0}', space=vmem, size = 0x400, scoped, tag = 'input window, operand 14, single buffered']
    #allocation14 [shape = 'u8[16384]{0}', space=vmem, size = 0x4000, scoped, tag = 'input window, operand 17, single buffered']
    #allocation15 [shape = 's32[1]{0}', space=sflag, size = 0x4, scoped, tag = 'scoped memory for tpu_custom_call.1']
    #allocation16 [shape = 'u8[16384]{0}', space=vmem, size = 0x4000, scoped, tag = 'input window, operand 19, single buffered']
    #allocation17 [shape = 'u8[4096]{0}', space=vmem, size = 0x1000, scoped, tag = 'output window, operand 0']
    %30 = vsyncpa [#allocation6], 0
    %31 = vsyncpa [#allocation9], 0
    %32 = vsyncpa [#allocation12], 0
    %s33 = scalar_lea.sflag [#allocation12], 1
    %34 = vsyncpa %s33, 0
    %35 = vsyncpa [#allocation15], 0
    %36 = vsyncpa [#allocation7], 0
    %s37 = scalar_lea.sflag [#allocation7], 1
    %38 = vsyncpa %s37, 0
    loop: start=0, step=1, limit=9
    $region2: #{tpu_custom_call.1} parent=1 // loop_pre_header
      _
    $region3: #{tpu_custom_call.1} parent=1 // loop_header
      %s40 = sphi 0, %s44
      %p41 = scmp.ge.s32.totalorder %s40, 9
      %s48 = sphi 0, %s48
      %s50 = sphi 0, %s48
      %s51 = sphi 0, %s50
      %s65 = sphi 0, %s51
      %s69 = sphi 0, %s69
      %s71 = sphi 0, %s69
      %s72 = sphi 0, %s71
      %s86 = sphi 0, %s72
      %s90 = sphi 0, %s90
      %s92 = sphi 0, %s90
      %s93 = sphi 0, %s92
      %s107 = sphi 0, %s93
      %s111 = sphi 0, %s111
      %s113 = sphi 0, %s111
      %s114 = sphi 0, %s113
      %s128 = sphi 0, %s114
      %s132 = sphi 0, %s132
      %s134 = sphi 0, %s132
      %s135 = sphi 0, %s134
      %s149 = sphi 0, %s135
      %s153 = sphi 0, %s153
      %s155 = sphi 0, %s153
      %s156 = sphi 0, %s155
      %s170 = sphi 0, %s156
      %s176 = sphi 0, %s178
      %s179 = sphi 0, %s176
      %s180 = sphi 0, %s179
      %s196 = sphi 0, %s180
      %s200 = sphi 0, %s200
      %s202 = sphi 0, %s200
      %s203 = sphi 0, %s202
      %s217 = sphi 0, %s203
      %s221 = sphi 0, %s221
      %s223 = sphi 0, %s221
      %s224 = sphi 0, %s223
      %s238 = sphi 0, %s224
      %s242 = sphi 0, %s242
      %s244 = sphi 0, %s242
      %s245 = sphi 0, %s244
      %s259 = sphi 0, %s245
      %s263 = sphi 0, %s263
      %s265 = sphi 0, %s263
      %s266 = sphi 0, %s265
      %s280 = sphi 0, %s266
      %s284 = sphi 0, %s284
      %s286 = sphi 0, %s284
      %s287 = sphi 0, %s286
      %s301 = sphi 0, %s287
      %s305 = sphi 0, %s305
      %s307 = sphi 0, %s305
      %s308 = sphi 0, %s307
      %s322 = sphi 0, %s308
      %s326 = sphi 0, %s326
      %s328 = sphi 0, %s326
      %s329 = sphi 0, %s328
      %s343 = sphi 0, %s329
      %s347 = sphi 0, %s347
      %s349 = sphi 0, %s347
      %s350 = sphi 0, %s349
      %s364 = sphi 0, %s350
      %s368 = sphi 0, %s368
      %s370 = sphi 0, %s368
      %s371 = sphi 0, %s370
      %s385 = sphi 0, %s371
      %s389 = sphi 0, %s389
      %s391 = sphi 0, %s389
      %s392 = sphi 0, %s391
      %s406 = sphi 0, %s392
      %s410 = sphi 0, %s410
      %s412 = sphi 0, %s410
      %s413 = sphi 0, %s412
      %s427 = sphi 0, %s413
      %s431 = sphi 0, %s431
      %s433 = sphi 0, %s431
      %s434 = sphi 0, %s433
      %s448 = sphi 0, %s434
      %s452 = sphi 0, %s452
      %s454 = sphi 0, %s452
      %s455 = sphi 0, %s454
      %s469 = sphi 0, %s455
      %s473 = sphi 0, %s473
      %s475 = sphi 0, %s473
      %s476 = sphi 0, %s475
      %s490 = sphi 0, %s476
      %s496 = sphi 0, %s498
      %s499 = sphi 0, %s496
      %s500 = sphi 0, %s499
      %s516 = sphi 0, %s500
      %s522 = sphi 0, %s524
      %s525 = sphi 0, %s522
      %s526 = sphi 0, %s525
      %s542 = sphi 0, %s526
    $region4: #{tpu_custom_call.1} parent=1 // loop_header_branch
      %43 = sbr.rel (%p41) target = $region8
    $region5: #{tpu_custom_call.1} parent=1 // loop_body
      %s45 = ssub.s32 %s40, 1
      %s46 = ssub.s32 %s40, 2
      %s47 = sadd.s32 %s40, 1
      %s49 = sadd.s32 %s48, 1
      %p52 = scmp.eq.s32.totalorder %s40, 6
      %p53 = scmp.ne.s32.totalorder %s48, %s50
      %p54 = scmp.eq.s32.totalorder %s40, 0
      %p55 = por %p53, %p54
      %p56 = scmp.ne.s32.totalorder %s48, %s50
      %p57 = scmp.eq.s32.totalorder %s45, 6
      %p58 = por %p56, %p57
      %p59 = scmp.ne.s32.totalorder %s50, %s51
      %p60 = scmp.eq.s32.totalorder %s45, 0
      %p61 = por %p59, %p60
      %p62 = scmp.ne.s32.totalorder %s50, %s51
      %p63 = scmp.eq.s32.totalorder %s46, 6
      %p64 = por %p62, %p63
      %p66 = scmp.ne.s32.totalorder %s51, %s65
      %p67 = scmp.eq.s32.totalorder %s46, 0
      %p68 = por %p66, %p67
      %s70 = sadd.s32 %s69, 1
      %p73 = scmp.eq.s32.totalorder %s40, 6
      %p74 = scmp.ne.s32.totalorder %s69, %s71
      %p75 = scmp.eq.s32.totalorder %s40, 0
      %p76 = por %p74, %p75
      %p77 = scmp.ne.s32.totalorder %s69, %s71
      %p78 = scmp.eq.s32.totalorder %s45, 6
      %p79 = por %p77, %p78
      %p80 = scmp.ne.s32.totalorder %s71, %s72
      %p81 = scmp.eq.s32.totalorder %s45, 0
      %p82 = por %p80, %p81
      %p83 = scmp.ne.s32.totalorder %s71, %s72
      %p84 = scmp.eq.s32.totalorder %s46, 6
      %p85 = por %p83, %p84
      %p87 = scmp.ne.s32.totalorder %s72, %s86
      %p88 = scmp.eq.s32.totalorder %s46, 0
      %p89 = por %p87, %p88
      %s91 = sadd.s32 %s90, 1
      %p94 = scmp.eq.s32.totalorder %s40, 6
      %p95 = scmp.ne.s32.totalorder %s90, %s92
      %p96 = scmp.eq.s32.totalorder %s40, 0
      %p97 = por %p95, %p96
      %p98 = scmp.ne.s32.totalorder %s90, %s92
      %p99 = scmp.eq.s32.totalorder %s45, 6
      %p100 = por %p98, %p99
      %p101 = scmp.ne.s32.totalorder %s92, %s93
      %p102 = scmp.eq.s32.totalorder %s45, 0
      %p103 = por %p101, %p102
      %p104 = scmp.ne.s32.totalorder %s92, %s93
      %p105 = scmp.eq.s32.totalorder %s46, 6
      %p106 = por %p104, %p105
      %p108 = scmp.ne.s32.totalorder %s93, %s107
      %p109 = scmp.eq.s32.totalorder %s46, 0
      %p110 = por %p108, %p109
      %s112 = sadd.s32 %s111, 1
      %p115 = scmp.eq.s32.totalorder %s40, 6
      %p116 = scmp.ne.s32.totalorder %s111, %s113
      %p117 = scmp.eq.s32.totalorder %s40, 0
      %p118 = por %p116, %p117
      %p119 = scmp.ne.s32.totalorder %s111, %s113
      %p120 = scmp.eq.s32.totalorder %s45, 6
      %p121 = por %p119, %p120
      %p122 = scmp.ne.s32.totalorder %s113, %s114
      %p123 = scmp.eq.s32.totalorder %s45, 0
      %p124 = por %p122, %p123
      %p125 = scmp.ne.s32.totalorder %s113, %s114
      %p126 = scmp.eq.s32.totalorder %s46, 6
      %p127 = por %p125, %p126
      %p129 = scmp.ne.s32.totalorder %s114, %s128
      %p130 = scmp.eq.s32.totalorder %s46, 0
      %p131 = por %p129, %p130
      %s133 = sadd.s32 %s132, 1
      %p136 = scmp.eq.s32.totalorder %s40, 6
      %p137 = scmp.ne.s32.totalorder %s132, %s134
      %p138 = scmp.eq.s32.totalorder %s40, 0
      %p139 = por %p137, %p138
      %p140 = scmp.ne.s32.totalorder %s132, %s134
      %p141 = scmp.eq.s32.totalorder %s45, 6
      %p142 = por %p140, %p141
      %p143 = scmp.ne.s32.totalorder %s134, %s135
      %p144 = scmp.eq.s32.totalorder %s45, 0
      %p145 = por %p143, %p144
      %p146 = scmp.ne.s32.totalorder %s134, %s135
      %p147 = scmp.eq.s32.totalorder %s46, 6
      %p148 = por %p146, %p147
      %p150 = scmp.ne.s32.totalorder %s135, %s149
      %p151 = scmp.eq.s32.totalorder %s46, 0
      %p152 = por %p150, %p151
      %s154 = sadd.s32 %s153, 1
      %p157 = scmp.eq.s32.totalorder %s40, 6
      %p158 = scmp.ne.s32.totalorder %s153, %s155
      %p159 = scmp.eq.s32.totalorder %s40, 0
      %p160 = por %p158, %p159
      %p161 = scmp.ne.s32.totalorder %s153, %s155
      %p162 = scmp.eq.s32.totalorder %s45, 6
      %p163 = por %p161, %p162
      %p164 = scmp.ne.s32.totalorder %s155, %s156
      %p165 = scmp.eq.s32.totalorder %s45, 0
      %p166 = por %p164, %p165
      %p167 = scmp.ne.s32.totalorder %s155, %s156
      %p168 = scmp.eq.s32.totalorder %s46, 6
      %p169 = por %p167, %p168
      %p171 = scmp.ne.s32.totalorder %s156, %s170
      %p172 = scmp.eq.s32.totalorder %s46, 0
      %p173 = por %p171, %p172
      %s174 = ssub.s32 %s40, %s47
      %p175 = scmp.eq.s32.totalorder %s174, 0
      %s177 = sadd.s32 %s176, 1
      %s178 = scalar_select %p175, %s176, %s177
      %p181 = pneg %p175
      %p182 = scmp.eq.s32.totalorder %s40, 6
      %p183 = por %p181, %p182
      %p184 = scmp.ne.s32.totalorder %s176, %s179
      %p185 = scmp.eq.s32.totalorder %s40, 0
      %p186 = por %p184, %p185
      %p187 = scmp.ne.s32.totalorder %s176, %s179
      %p188 = scmp.eq.s32.totalorder %s45, 6
      %p189 = por %p187, %p188
      %p190 = scmp.ne.s32.totalorder %s179, %s180
      %p191 = scmp.eq.s32.totalorder %s45, 0
      %p192 = por %p190, %p191
      %p193 = scmp.ne.s32.totalorder %s179, %s180
      %p194 = scmp.eq.s32.totalorder %s46, 6
      %p195 = por %p193, %p194
      %p197 = scmp.ne.s32.totalorder %s180, %s196
      %p198 = scmp.eq.s32.totalorder %s46, 0
      %p199 = por %p197, %p198
      %s201 = sadd.s32 %s200, 1
      %p204 = scmp.eq.s32.totalorder %s40, 6
      %p205 = scmp.ne.s32.totalorder %s200, %s202
      %p206 = scmp.eq.s32.totalorder %s40, 0
      %p207 = por %p205, %p206
      %p208 = scmp.ne.s32.totalorder %s200, %s202
      %p209 = scmp.eq.s32.totalorder %s45, 6
      %p210 = por %p208, %p209
      %p211 = scmp.ne.s32.totalorder %s202, %s203
      %p212 = scmp.eq.s32.totalorder %s45, 0
      %p213 = por %p211, %p212
      %p214 = scmp.ne.s32.totalorder %s202, %s203
      %p215 = scmp.eq.s32.totalorder %s46, 6
      %p216 = por %p214, %p215
      %p218 = scmp.ne.s32.totalorder %s203, %s217
      %p219 = scmp.eq.s32.totalorder %s46, 0
      %p220 = por %p218, %p219
      %s222 = sadd.s32 %s221, 1
      %p225 = scmp.eq.s32.totalorder %s40, 6
      %p226 = scmp.ne.s32.totalorder %s221, %s223
      %p227 = scmp.eq.s32.totalorder %s40, 0
      %p228 = por %p226, %p227
      %p229 = scmp.ne.s32.totalorder %s221, %s223
      %p230 = scmp.eq.s32.totalorder %s45, 6
      %p231 = por %p229, %p230
      %p232 = scmp.ne.s32.totalorder %s223, %s224
      %p233 = scmp.eq.s32.totalorder %s45, 0
      %p234 = por %p232, %p233
      %p235 = scmp.ne.s32.totalorder %s223, %s224
      %p236 = scmp.eq.s32.totalorder %s46, 6
      %p237 = por %p235, %p236
      %p239 = scmp.ne.s32.totalorder %s224, %s238
      %p240 = scmp.eq.s32.totalorder %s46, 0
      %p241 = por %p239, %p240
      %s243 = sadd.s32 %s242, 1
      %p246 = scmp.eq.s32.totalorder %s40, 6
      %p247 = scmp.ne.s32.totalorder %s242, %s244
      %p248 = scmp.eq.s32.totalorder %s40, 0
      %p249 = por %p247, %p248
      %p250 = scmp.ne.s32.totalorder %s242, %s244
      %p251 = scmp.eq.s32.totalorder %s45, 6
      %p252 = por %p250, %p251
      %p253 = scmp.ne.s32.totalorder %s244, %s245
      %p254 = scmp.eq.s32.totalorder %s45, 0
      %p255 = por %p253, %p254
      %p256 = scmp.ne.s32.totalorder %s244, %s245
      %p257 = scmp.eq.s32.totalorder %s46, 6
      %p258 = por %p256, %p257
      %p260 = scmp.ne.s32.totalorder %s245, %s259
      %p261 = scmp.eq.s32.totalorder %s46, 0
      %p262 = por %p260, %p261
      %s264 = sadd.s32 %s263, 1
      %p267 = scmp.eq.s32.totalorder %s40, 6
      %p268 = scmp.ne.s32.totalorder %s263, %s265
      %p269 = scmp.eq.s32.totalorder %s40, 0
      %p270 = por %p268, %p269
      %p271 = scmp.ne.s32.totalorder %s263, %s265
      %p272 = scmp.eq.s32.totalorder %s45, 6
      %p273 = por %p271, %p272
      %p274 = scmp.ne.s32.totalorder %s265, %s266
      %p275 = scmp.eq.s32.totalorder %s45, 0
      %p276 = por %p274, %p275
      %p277 = scmp.ne.s32.totalorder %s265, %s266
      %p278 = scmp.eq.s32.totalorder %s46, 6
      %p279 = por %p277, %p278
      %p281 = scmp.ne.s32.totalorder %s266, %s280
      %p282 = scmp.eq.s32.totalorder %s46, 0
      %p283 = por %p281, %p282
      %s285 = sadd.s32 %s284, 1
      %p288 = scmp.eq.s32.totalorder %s40, 6
      %p289 = scmp.ne.s32.totalorder %s284, %s286
      %p290 = scmp.eq.s32.totalorder %s40, 0
      %p291 = por %p289, %p290
      %p292 = scmp.ne.s32.totalorder %s284, %s286
      %p293 = scmp.eq.s32.totalorder %s45, 6
      %p294 = por %p292, %p293
      %p295 = scmp.ne.s32.totalorder %s286, %s287
      %p296 = scmp.eq.s32.totalorder %s45, 0
      %p297 = por %p295, %p296
      %p298 = scmp.ne.s32.totalorder %s286, %s287
      %p299 = scmp.eq.s32.totalorder %s46, 6
      %p300 = por %p298, %p299
      %p302 = scmp.ne.s32.totalorder %s287, %s301
      %p303 = scmp.eq.s32.totalorder %s46, 0
      %p304 = por %p302, %p303
      %s306 = sadd.s32 %s305, 1
      %p309 = scmp.eq.s32.totalorder %s40, 6
      %p310 = scmp.ne.s32.totalorder %s305, %s307
      %p311 = scmp.eq.s32.totalorder %s40, 0
      %p312 = por %p310, %p311
      %p313 = scmp.ne.s32.totalorder %s305, %s307
      %p314 = scmp.eq.s32.totalorder %s45, 6
      %p315 = por %p313, %p314
      %p316 = scmp.ne.s32.totalorder %s307, %s308
      %p317 = scmp.eq.s32.totalorder %s45, 0
      %p318 = por %p316, %p317
      %p319 = scmp.ne.s32.totalorder %s307, %s308
      %p320 = scmp.eq.s32.totalorder %s46, 6
      %p321 = por %p319, %p320
      %p323 = scmp.ne.s32.totalorder %s308, %s322
      %p324 = scmp.eq.s32.totalorder %s46, 0
      %p325 = por %p323, %p324
      %s327 = sadd.s32 %s326, 1
      %p330 = scmp.eq.s32.totalorder %s40, 6
      %p331 = scmp.ne.s32.totalorder %s326, %s328
      %p332 = scmp.eq.s32.totalorder %s40, 0
      %p333 = por %p331, %p332
      %p334 = scmp.ne.s32.totalorder %s326, %s328
      %p335 = scmp.eq.s32.totalorder %s45, 6
      %p336 = por %p334, %p335
      %p337 = scmp.ne.s32.totalorder %s328, %s329
      %p338 = scmp.eq.s32.totalorder %s45, 0
      %p339 = por %p337, %p338
      %p340 = scmp.ne.s32.totalorder %s328, %s329
      %p341 = scmp.eq.s32.totalorder %s46, 6
      %p342 = por %p340, %p341
      %p344 = scmp.ne.s32.totalorder %s329, %s343
      %p345 = scmp.eq.s32.totalorder %s46, 0
      %p346 = por %p344, %p345
      %s348 = sadd.s32 %s347, 1
      %p351 = scmp.eq.s32.totalorder %s40, 6
      %p352 = scmp.ne.s32.totalorder %s347, %s349
      %p353 = scmp.eq.s32.totalorder %s40, 0
      %p354 = por %p352, %p353
      %p355 = scmp.ne.s32.totalorder %s347, %s349
      %p356 = scmp.eq.s32.totalorder %s45, 6
      %p357 = por %p355, %p356
      %p358 = scmp.ne.s32.totalorder %s349, %s350
      %p359 = scmp.eq.s32.totalorder %s45, 0
      %p360 = por %p358, %p359
      %p361 = scmp.ne.s32.totalorder %s349, %s350
      %p362 = scmp.eq.s32.totalorder %s46, 6
      %p363 = por %p361, %p362
      %p365 = scmp.ne.s32.totalorder %s350, %s364
      %p366 = scmp.eq.s32.totalorder %s46, 0
      %p367 = por %p365, %p366
      %s369 = sadd.s32 %s368, 1
      %p372 = scmp.eq.s32.totalorder %s40, 6
      %p373 = scmp.ne.s32.totalorder %s368, %s370
      %p374 = scmp.eq.s32.totalorder %s40, 0
      %p375 = por %p373, %p374
      %p376 = scmp.ne.s32.totalorder %s368, %s370
      %p377 = scmp.eq.s32.totalorder %s45, 6
      %p378 = por %p376, %p377
      %p379 = scmp.ne.s32.totalorder %s370, %s371
      %p380 = scmp.eq.s32.totalorder %s45, 0
      %p381 = por %p379, %p380
      %p382 = scmp.ne.s32.totalorder %s370, %s371
      %p383 = scmp.eq.s32.totalorder %s46, 6
      %p384 = por %p382, %p383
      %p386 = scmp.ne.s32.totalorder %s371, %s385
      %p387 = scmp.eq.s32.totalorder %s46, 0
      %p388 = por %p386, %p387
      %s390 = sadd.s32 %s389, 1
      %p393 = scmp.eq.s32.totalorder %s40, 6
      %p394 = scmp.ne.s32.totalorder %s389, %s391
      %p395 = scmp.eq.s32.totalorder %s40, 0
      %p396 = por %p394, %p395
      %p397 = scmp.ne.s32.totalorder %s389, %s391
      %p398 = scmp.eq.s32.totalorder %s45, 6
      %p399 = por %p397, %p398
      %p400 = scmp.ne.s32.totalorder %s391, %s392
      %p401 = scmp.eq.s32.totalorder %s45, 0
      %p402 = por %p400, %p401
      %p403 = scmp.ne.s32.totalorder %s391, %s392
      %p404 = scmp.eq.s32.totalorder %s46, 6
      %p405 = por %p403, %p404
      %p407 = scmp.ne.s32.totalorder %s392, %s406
      %p408 = scmp.eq.s32.totalorder %s46, 0
      %p409 = por %p407, %p408
      %s411 = sadd.s32 %s410, 1
      %p414 = scmp.eq.s32.totalorder %s40, 6
      %p415 = scmp.ne.s32.totalorder %s410, %s412
      %p416 = scmp.eq.s32.totalorder %s40, 0
      %p417 = por %p415, %p416
      %p418 = scmp.ne.s32.totalorder %s410, %s412
      %p419 = scmp.eq.s32.totalorder %s45, 6
      %p420 = por %p418, %p419
      %p421 = scmp.ne.s32.totalorder %s412, %s413
      %p422 = scmp.eq.s32.totalorder %s45, 0
      %p423 = por %p421, %p422
      %p424 = scmp.ne.s32.totalorder %s412, %s413
      %p425 = scmp.eq.s32.totalorder %s46, 6
      %p426 = por %p424, %p425
      %p428 = scmp.ne.s32.totalorder %s413, %s427
      %p429 = scmp.eq.s32.totalorder %s46, 0
      %p430 = por %p428, %p429
      %s432 = sadd.s32 %s431, 1
      %p435 = scmp.eq.s32.totalorder %s40, 6
      %p436 = scmp.ne.s32.totalorder %s431, %s433
      %p437 = scmp.eq.s32.totalorder %s40, 0
      %p438 = por %p436, %p437
      %p439 = scmp.ne.s32.totalorder %s431, %s433
      %p440 = scmp.eq.s32.totalorder %s45, 6
      %p441 = por %p439, %p440
      %p442 = scmp.ne.s32.totalorder %s433, %s434
      %p443 = scmp.eq.s32.totalorder %s45, 0
      %p444 = por %p442, %p443
      %p445 = scmp.ne.s32.totalorder %s433, %s434
      %p446 = scmp.eq.s32.totalorder %s46, 6
      %p447 = por %p445, %p446
      %p449 = scmp.ne.s32.totalorder %s434, %s448
      %p450 = scmp.eq.s32.totalorder %s46, 0
      %p451 = por %p449, %p450
      %s453 = sadd.s32 %s452, 1
      %p456 = scmp.eq.s32.totalorder %s40, 6
      %p457 = scmp.ne.s32.totalorder %s452, %s454
      %p458 = scmp.eq.s32.totalorder %s40, 0
      %p459 = por %p457, %p458
      %p460 = scmp.ne.s32.totalorder %s452, %s454
      %p461 = scmp.eq.s32.totalorder %s45, 6
      %p462 = por %p460, %p461
      %p463 = scmp.ne.s32.totalorder %s454, %s455
      %p464 = scmp.eq.s32.totalorder %s45, 0
      %p465 = por %p463, %p464
      %p466 = scmp.ne.s32.totalorder %s454, %s455
      %p467 = scmp.eq.s32.totalorder %s46, 6
      %p468 = por %p466, %p467
      %p470 = scmp.ne.s32.totalorder %s455, %s469
      %p471 = scmp.eq.s32.totalorder %s46, 0
      %p472 = por %p470, %p471
      %s474 = sadd.s32 %s473, 1
      %p477 = scmp.eq.s32.totalorder %s40, 6
      %p478 = scmp.ne.s32.totalorder %s473, %s475
      %p479 = scmp.eq.s32.totalorder %s40, 0
      %p480 = por %p478, %p479
      %p481 = scmp.ne.s32.totalorder %s473, %s475
      %p482 = scmp.eq.s32.totalorder %s45, 6
      %p483 = por %p481, %p482
      %p484 = scmp.ne.s32.totalorder %s475, %s476
      %p485 = scmp.eq.s32.totalorder %s45, 0
      %p486 = por %p484, %p485
      %p487 = scmp.ne.s32.totalorder %s475, %s476
      %p488 = scmp.eq.s32.totalorder %s46, 6
      %p489 = por %p487, %p488
      %p491 = scmp.ne.s32.totalorder %s476, %s490
      %p492 = scmp.eq.s32.totalorder %s46, 0
      %p493 = por %p491, %p492
      %s494 = ssub.s32 %s40, %s47
      %p495 = scmp.eq.s32.totalorder %s494, 0
      %s497 = sadd.s32 %s496, 1
      %s498 = scalar_select %p495, %s496, %s497
      %p501 = pneg %p495
      %p502 = scmp.eq.s32.totalorder %s40, 6
      %p503 = por %p501, %p502
      %p504 = scmp.ne.s32.totalorder %s496, %s499
      %p505 = scmp.eq.s32.totalorder %s40, 0
      %p506 = por %p504, %p505
      %p507 = scmp.ne.s32.totalorder %s496, %s499
      %p508 = scmp.eq.s32.totalorder %s45, 6
      %p509 = por %p507, %p508
      %p510 = scmp.ne.s32.totalorder %s499, %s500
      %p511 = scmp.eq.s32.totalorder %s45, 0
      %p512 = por %p510, %p511
      %p513 = scmp.ne.s32.totalorder %s499, %s500
      %p514 = scmp.eq.s32.totalorder %s46, 6
      %p515 = por %p513, %p514
      %p517 = scmp.ne.s32.totalorder %s500, %s516
      %p518 = scmp.eq.s32.totalorder %s46, 0
      %p519 = por %p517, %p518
      %s520 = ssub.s32 %s40, %s47
      %p521 = scmp.eq.s32.totalorder %s520, 0
      %s523 = sadd.s32 %s522, 1
      %s524 = scalar_select %p521, %s522, %s523
      %p527 = pneg %p521
      %p528 = scmp.eq.s32.totalorder %s40, 6
      %p529 = por %p527, %p528
      %p530 = scmp.ne.s32.totalorder %s522, %s525
      %p531 = scmp.eq.s32.totalorder %s40, 0
      %p532 = por %p530, %p531
      %p533 = scmp.ne.s32.totalorder %s522, %s525
      %p534 = scmp.eq.s32.totalorder %s45, 6
      %p535 = por %p533, %p534
      %p536 = scmp.ne.s32.totalorder %s525, %s526
      %p537 = scmp.eq.s32.totalorder %s45, 0
      %p538 = por %p536, %p537
      %p539 = scmp.ne.s32.totalorder %s525, %s526
      %p540 = scmp.eq.s32.totalorder %s46, 6
      %p541 = por %p539, %p540
      %p543 = scmp.ne.s32.totalorder %s526, %s542
      %p544 = scmp.eq.s32.totalorder %s46, 0
      %p545 = por %p543, %p544
      %p546 = scmp.le.s32.totalorder 1, %s40
      %p547 = scmp.lt.s32.totalorder %s40, 8
      %p548 = pnand %p546, %p547
      %p549 = pneg %p548
      // Predicated region
      $region9: #{tpu_custom_call.1} parent=5 // pred_check
        _
      $region10: #{tpu_custom_call.1} parent=5 // pred_check_branch
        %551 = sbr.rel (%p548) target = $region12
      $region11: #{tpu_custom_call.1} parent=5 // pred_region
        %s552 = ssub.s32 %s40, 1
        // Predicated region
        $region13: #{tpu_custom_call.1} parent=11 // pred_check
          %p553 = pneg %p61
        $region14: #{tpu_custom_call.1} parent=11 // pred_check_branch
          %555 = sbr.rel (%p553) target = $region16
        $region15: #{tpu_custom_call.1} parent=11 // pred_region
          _
        $region16: #{tpu_custom_call.1} parent=11 // pred_fallthru
          _
        // Predicated region
        $region17: #{tpu_custom_call.1} parent=11 // pred_check
          %p556 = pneg %p82
        $region18: #{tpu_custom_call.1} parent=11 // pred_check_branch
          %558 = sbr.rel (%p556) target = $region20
        $region19: #{tpu_custom_call.1} parent=11 // pred_region
          _
        $region20: #{tpu_custom_call.1} parent=11 // pred_fallthru
          _
        // Predicated region
        $region21: #{tpu_custom_call.1} parent=11 // pred_check
          %p559 = pneg %p103
        $region22: #{tpu_custom_call.1} parent=11 // pred_check_branch
          %561 = sbr.rel (%p559) target = $region24
        $region23: #{tpu_custom_call.1} parent=11 // pred_region
          %s563 = ssub.s32 64, 64
          %564 = vsyncadd [#allocation6], %s563
          %s566 = sshll.u32 [#allocation5], 4
          %s567 = int_to_ptr.vmem [resolvable:$true] %s566
          %569 = dma.hbm_to_vmem [thread:$0]  %s2, 64, %s567, [#allocation6]
        $region24: #{tpu_custom_call.1} parent=11 // pred_fallthru
          _
        // Predicated region
        $region25: #{tpu_custom_call.1} parent=11 // pred_check
          %p570 = pneg %p124
        $region26: #{tpu_custom_call.1} parent=11 // pred_check_branch
          %572 = sbr.rel (%p570) target = $region28
        $region27: #{tpu_custom_call.1} parent=11 // pred_region
          _
        $region28: #{tpu_custom_call.1} parent=11 // pred_fallthru
          _
        // Predicated region
        $region29: #{tpu_custom_call.1} parent=11 // pred_check
          %p573 = pneg %p145
        $region30: #{tpu_custom_call.1} parent=11 // pred_check_branch
          %575 = sbr.rel (%p573) target = $region32
        $region31: #{tpu_custom_call.1} parent=11 // pred_region
          %s577 = ssub.s32 64, 64
          %578 = vsyncadd [#allocation9], %s577
          %s580 = sshll.u32 [#allocation8], 4
          %s581 = int_to_ptr.vmem [resolvable:$true] %s580
          %583 = dma.hbm_to_vmem [thread:$0]  %s4, 64, %s581, [#allocation9]
        $region32: #{tpu_custom_call.1} parent=11 // pred_fallthru
          _
        // Predicated region
        $region33: #{tpu_custom_call.1} parent=11 // pred_check
          %p584 = pneg %p166
        $region34: #{tpu_custom_call.1} parent=11 // pred_check_branch
          %586 = sbr.rel (%p584) target = $region36
        $region35: #{tpu_custom_call.1} parent=11 // pred_region
          %s588 = ssub.s32 64, 64
          %589 = vsyncadd [#allocation9], %s588
          %s591 = sshll.u32 [#allocation10], 4
          %s592 = int_to_ptr.vmem [resolvable:$true] %s591
          %594 = dma.hbm_to_vmem [thread:$0]  %s5, 64, %s592, [#allocation9]
        $region36: #{tpu_custom_call.1} parent=11 // pred_fallthru
          _
        // Predicated region
        $region37: #{tpu_custom_call.1} parent=11 // pred_check
          %p595 = pneg %p213
        $region38: #{tpu_custom_call.1} parent=11 // pred_check_branch
          %597 = sbr.rel (%p595) target = $region40
        $region39: #{tpu_custom_call.1} parent=11 // pred_region
          _
        $region40: #{tpu_custom_call.1} parent=11 // pred_fallthru
          _
        // Predicated region
        $region41: #{tpu_custom_call.1} parent=11 // pred_check
          %p598 = pneg %p234
        $region42: #{tpu_custom_call.1} parent=11 // pred_check_branch
          %600 = sbr.rel (%p598) target = $region44
        $region43: #{tpu_custom_call.1} parent=11 // pred_region
          _
        $region44: #{tpu_custom_call.1} parent=11 // pred_fallthru
          _
        // Predicated region
        $region45: #{tpu_custom_call.1} parent=11 // pred_check
          %p601 = pneg %p255
        $region46: #{tpu_custom_call.1} parent=11 // pred_check_branch
          %603 = sbr.rel (%p601) target = $region48
        $region47: #{tpu_custom_call.1} parent=11 // pred_region
          _
        $region48: #{tpu_custom_call.1} parent=11 // pred_fallthru
          _
        // Predicated region
        $region49: #{tpu_custom_call.1} parent=11 // pred_check
          %p604 = pneg %p276
        $region50: #{tpu_custom_call.1} parent=11 // pred_check_branch
          %606 = sbr.rel (%p604) target = $region52
        $region51: #{tpu_custom_call.1} parent=11 // pred_region
          _
        $region52: #{tpu_custom_call.1} parent=11 // pred_fallthru
          _
        // Predicated region
        $region53: #{tpu_custom_call.1} parent=11 // pred_check
          %p607 = pneg %p297
        $region54: #{tpu_custom_call.1} parent=11 // pred_check_branch
          %609 = sbr.rel (%p607) target = $region56
        $region55: #{tpu_custom_call.1} parent=11 // pred_region
          _
        $region56: #{tpu_custom_call.1} parent=11 // pred_fallthru
          _
        // Predicated region
        $region57: #{tpu_custom_call.1} parent=11 // pred_check
          %p610 = pneg %p318
        $region58: #{tpu_custom_call.1} parent=11 // pred_check_branch
          %612 = sbr.rel (%p610) target = $region60
        $region59: #{tpu_custom_call.1} parent=11 // pred_region
          _
        $region60: #{tpu_custom_call.1} parent=11 // pred_fallthru
          _
        // Predicated region
        $region61: #{tpu_custom_call.1} parent=11 // pred_check
          %p613 = pneg %p339
        $region62: #{tpu_custom_call.1} parent=11 // pred_check_branch
          %615 = sbr.rel (%p613) target = $region64
        $region63: #{tpu_custom_call.1} parent=11 // pred_region
          _
        $region64: #{tpu_custom_call.1} parent=11 // pred_fallthru
          _
        // Predicated region
        $region65: #{tpu_custom_call.1} parent=11 // pred_check
          %p616 = pneg %p360
        $region66: #{tpu_custom_call.1} parent=11 // pred_check_branch
          %618 = sbr.rel (%p616) target = $region68
        $region67: #{tpu_custom_call.1} parent=11 // pred_region
          %s620 = ssub.s32 16, 16
          %621 = vsyncadd [#allocation12], %s620
          %s623 = sshll.u32 [#allocation13], 4
          %s624 = int_to_ptr.vmem [resolvable:$true] %s623
          %626 = dma.hbm_to_vmem [thread:$0]  %s14, 16, %s624, [#allocation12]
        $region68: #{tpu_custom_call.1} parent=11 // pred_fallthru
          _
        // Predicated region
        $region69: #{tpu_custom_call.1} parent=11 // pred_check
          %p627 = pneg %p381
        $region70: #{tpu_custom_call.1} parent=11 // pred_check_branch
          %629 = sbr.rel (%p627) target = $region72
        $region71: #{tpu_custom_call.1} parent=11 // pred_region
          _
        $region72: #{tpu_custom_call.1} parent=11 // pred_fallthru
          _
        // Predicated region
        $region73: #{tpu_custom_call.1} parent=11 // pred_check
          %p630 = pneg %p402
        $region74: #{tpu_custom_call.1} parent=11 // pred_check_branch
          %632 = sbr.rel (%p630) target = $region76
        $region75: #{tpu_custom_call.1} parent=11 // pred_region
          _
        $region76: #{tpu_custom_call.1} parent=11 // pred_fallthru
          _
        // Predicated region
        $region77: #{tpu_custom_call.1} parent=11 // pred_check
          %p633 = pneg %p423
        $region78: #{tpu_custom_call.1} parent=11 // pred_check_branch
          %635 = sbr.rel (%p633) target = $region80
        $region79: #{tpu_custom_call.1} parent=11 // pred_region
          %s637 = ssub.s32 512, 512
          %638 = vsyncadd [#allocation15], %s637
          %s639 = sshll.u32 [#allocation14], 4
          %s640 = int_to_ptr.vmem [resolvable:$true] %s639
          %645 = dma.hbm_to_vmem [thread:$0]  %s17, 512, %s640, [#allocation15], 128, 128, 8
        $region80: #{tpu_custom_call.1} parent=11 // pred_fallthru
          _
        // Predicated region
        $region81: #{tpu_custom_call.1} parent=11 // pred_check
          %p646 = pneg %p444
        $region82: #{tpu_custom_call.1} parent=11 // pred_check_branch
          %648 = sbr.rel (%p646) target = $region84
        $region83: #{tpu_custom_call.1} parent=11 // pred_region
          _
        $region84: #{tpu_custom_call.1} parent=11 // pred_fallthru
          _
        // Predicated region
        $region85: #{tpu_custom_call.1} parent=11 // pred_check
          %p649 = pneg %p465
        $region86: #{tpu_custom_call.1} parent=11 // pred_check_branch
          %651 = sbr.rel (%p649) target = $region88
        $region87: #{tpu_custom_call.1} parent=11 // pred_region
          %s653 = ssub.s32 512, 512
          %654 = vsyncadd [#allocation15], %s653
          %s655 = sshll.u32 [#allocation16], 4
          %s656 = int_to_ptr.vmem [resolvable:$true] %s655
          %661 = dma.hbm_to_vmem [thread:$0]  %s19, 512, %s656, [#allocation15], 128, 128, 8
        $region88: #{tpu_custom_call.1} parent=11 // pred_fallthru
          _
        // Predicated region
        $region89: #{tpu_custom_call.1} parent=11 // pred_check
          %p662 = pneg %p486
        $region90: #{tpu_custom_call.1} parent=11 // pred_check_branch
          %664 = sbr.rel (%p662) target = $region92
        $region91: #{tpu_custom_call.1} parent=11 // pred_region
          _
        $region92: #{tpu_custom_call.1} parent=11 // pred_fallthru
          _
      $region12: #{tpu_custom_call.1} parent=5 // pred_fallthru
        _
      %p665 = scmp.lt.s32.totalorder %s40, 7
      // Predicated region
      $region93: #{tpu_custom_call.1} parent=5 // pred_check
        %p666 = pneg %p665
      $region94: #{tpu_custom_call.1} parent=5 // pred_check_branch
        %668 = sbr.rel (%p666) target = $region96
      $region95: #{tpu_custom_call.1} parent=5 // pred_region
        // Predicated region
        $region97: #{tpu_custom_call.1} parent=95 // pred_check
          %p669 = pneg %p186
        $region98: #{tpu_custom_call.1} parent=95 // pred_check_branch
          %671 = sbr.rel (%p669) target = $region100
        $region99: #{tpu_custom_call.1} parent=95 // pred_region
          %s672 = sand.u32 %s40, 1
          %s673 = scalar_lea.sflag [#allocation12], %s672
          %s674 = sand.u32 %s176, 1
          %s675 = smul.addr %s674, 4
          %s676 = scalar_lea.vmem [#allocation11], %s675
          %s678 = ssub.s32 64, 64
          %679 = vsyncadd %s673, %s678
          %s680 = smul.addr %s40, 64
          %s681 = scalar_lea.hbm %s6, %s680
          %s683 = sshll.u32 %s676, 4
          %s684 = int_to_ptr.vmem [resolvable:$true] %s683
          %686 = dma.hbm_to_vmem [thread:$0]  %s681, 64, %s684, %s673
        $region100: #{tpu_custom_call.1} parent=95 // pred_fallthru
          _
      $region96: #{tpu_custom_call.1} parent=5 // pred_fallthru
        _
      %p687 = scmp.le.s32.totalorder 1, %s40
      %p688 = scmp.lt.s32.totalorder %s40, 8
      %p689 = pnand %p687, %p688
      %p690 = pneg %p689
      // Predicated region
      $region101: #{tpu_custom_call.1} parent=5 // pred_check
        _
      $region102: #{tpu_custom_call.1} parent=5 // pred_check_branch
        %692 = sbr.rel (%p689) target = $region104
      $region103: #{tpu_custom_call.1} parent=5 // pred_region
        %s693 = ssub.s32 %s40, 1
        // Predicated region
        $region105: #{tpu_custom_call.1} parent=103 // pred_check
          %p694 = pneg %p103
        $region106: #{tpu_custom_call.1} parent=103 // pred_check_branch
          %696 = sbr.rel (%p694) target = $region108
        $region107: #{tpu_custom_call.1} parent=103 // pred_region
          %697 = dma.done [#allocation6], 64
        $region108: #{tpu_custom_call.1} parent=103 // pred_fallthru
          _
        // Predicated region
        $region109: #{tpu_custom_call.1} parent=103 // pred_check
          %p698 = pneg %p145
        $region110: #{tpu_custom_call.1} parent=103 // pred_check_branch
          %700 = sbr.rel (%p698) target = $region112
        $region111: #{tpu_custom_call.1} parent=103 // pred_region
          %701 = dma.done [#allocation9], 64
        $region112: #{tpu_custom_call.1} parent=103 // pred_fallthru
          _
        // Predicated region
        $region113: #{tpu_custom_call.1} parent=103 // pred_check
          %p702 = pneg %p166
        $region114: #{tpu_custom_call.1} parent=103 // pred_check_branch
          %704 = sbr.rel (%p702) target = $region116
        $region115: #{tpu_custom_call.1} parent=103 // pred_region
          %705 = dma.done [#allocation9], 64
        $region116: #{tpu_custom_call.1} parent=103 // pred_fallthru
          _
        %s706 = sand.u32 %s45, 1
        %s707 = scalar_lea.sflag [#allocation12], %s706
        %s708 = sand.u32 %s179, 1
        %s709 = smul.addr %s708, 4
        %s710 = scalar_lea.vmem [#allocation11], %s709
        // Predicated region
        $region117: #{tpu_custom_call.1} parent=103 // pred_check
          %p711 = pneg %p192
        $region118: #{tpu_custom_call.1} parent=103 // pred_check_branch
          %713 = sbr.rel (%p711) target = $region120
        $region119: #{tpu_custom_call.1} parent=103 // pred_region
          %714 = dma.done %s707, 64
        $region120: #{tpu_custom_call.1} parent=103 // pred_fallthru
          _
        // Predicated region
        $region121: #{tpu_custom_call.1} parent=103 // pred_check
          %p715 = pneg %p360
        $region122: #{tpu_custom_call.1} parent=103 // pred_check_branch
          %717 = sbr.rel (%p715) target = $region124
        $region123: #{tpu_custom_call.1} parent=103 // pred_region
          %718 = dma.done [#allocation12], 16
        $region124: #{tpu_custom_call.1} parent=103 // pred_fallthru
          _
        // Predicated region
        $region125: #{tpu_custom_call.1} parent=103 // pred_check
          %p719 = pneg %p423
        $region126: #{tpu_custom_call.1} parent=103 // pred_check_branch
          %721 = sbr.rel (%p719) target = $region128
        $region127: #{tpu_custom_call.1} parent=103 // pred_region
          %722 = dma.done [#allocation15], 512
        $region128: #{tpu_custom_call.1} parent=103 // pred_fallthru
          _
        // Predicated region
        $region129: #{tpu_custom_call.1} parent=103 // pred_check
          %p723 = pneg %p465
        $region130: #{tpu_custom_call.1} parent=103 // pred_check_branch
          %725 = sbr.rel (%p723) target = $region132
        $region131: #{tpu_custom_call.1} parent=103 // pred_region
          %726 = dma.done [#allocation15], 512
        $region132: #{tpu_custom_call.1} parent=103 // pred_fallthru
          _
        %p727 = pneg %p61
        %p728 = pneg %p58
        %p729 = pneg %p82
        %p730 = pneg %p79
        %p731 = pneg %p103
        %p732 = pneg %p100
        %p733 = pneg %p124
        %p734 = pneg %p121
        %p735 = pneg %p145
        %p736 = pneg %p142
        %p737 = pneg %p166
        %p738 = pneg %p163
        %s739 = sand.u32 %s45, 1
        %s740 = scalar_lea.sflag [#allocation12], %s739
        %s741 = sand.u32 %s179, 1
        %s742 = smul.addr %s741, 4
        %s743 = scalar_lea.vmem [#allocation11], %s742
        %p744 = pneg %p192
        %p745 = pneg %p189
        %p746 = pneg %p213
        %p747 = pneg %p210
        %p748 = pneg %p234
        %p749 = pneg %p231
        %p750 = pneg %p255
        %p751 = pneg %p252
        %p752 = pneg %p276
        %p753 = pneg %p273
        %p754 = pneg %p297
        %p755 = pneg %p294
        %p756 = pneg %p318
        %p757 = pneg %p315
        %p758 = pneg %p339
        %p759 = pneg %p336
        %p760 = pneg %p360
        %p761 = pneg %p357
        %p762 = pneg %p381
        %p763 = pneg %p378
        %p764 = pneg %p402
        %p765 = pneg %p399
        %p766 = pneg %p423
        %p767 = pneg %p420
        %p768 = pneg %p444
        %p769 = pneg %p441
        %p770 = pneg %p465
        %p771 = pneg %p462
        %p772 = pneg %p486
        %p773 = pneg %p483
        %p774 = pneg %p512
        %p775 = pneg %p509
        %s776 = sand.u32 %s499, 1
        %s777 = scalar_lea.sflag [#allocation7], %s776
        %s778 = sand.u32 %s499, 1
        %s779 = smul.addr %s778, 4
        %s780 = scalar_lea.vmem [#allocation17], %s779
        %p781 = pneg %p538
        %p782 = pneg %p535
        %p783 = scmp.lt.s32.totalorder %s45, 6
        %s784 = scalar_select %p783, %s45, 6
        %s785 = smul.addr %s784, 8
        %s786 = smul.addr %s785, 8
        %s787 = scalar_lea.vmem %s22, %s786
        %p788 = scmp.lt.s32.totalorder %s45, 6
        %s789 = scalar_select %p788, %s45, 6
        %s790 = smul.addr %s789, 8
        %s791 = smul.addr %s790, 8
        %s792 = scalar_lea.vmem %s22, %s791
        %p793 = scmp.eq.s32.totalorder %s45, 0
        // Predicated region
        $region133: #{tpu_custom_call.1} parent=103 // pred_check
          %p794 = pneg %p793
        $region134: #{tpu_custom_call.1} parent=103 // pred_check_branch
          %796 = sbr.rel (%p794) target = $region136
        $region135: #{tpu_custom_call.1} parent=103 // pred_region
          %v797 = vld [vmem:[#allocation8] sm:$0xf]
          %vm798 = vcmask 257024
          %799 = vst.msk [vmem:[#allocation2] sm:$0xf] %vm798, %v797
          %v800 = vld [vmem:[#allocation10] sm:$0xf]
          %801 = vst.msk [vmem:[#allocation3] sm:$0xf] %vm798, %v800
        $region136: #{tpu_custom_call.1} parent=103 // pred_fallthru
          _
        %v802 = vld [vmem:[#allocation2] sm:$0xf]
        %v803 = vld [vmem:[#allocation3] sm:$0xf]
        %v804 = vld [vmem:[%s710] sm:$0xf]
        %v805 = vld [vmem:[%s3] sm:$0xff]
        %v806 = vld [vmem:[%s3 + $0x8] sm:$0xff]
        %v807 = vld [vmem:[%s3 + $0x10] sm:$0xff]
        %v808 = vld [vmem:[%s3 + $0x18] sm:$0xff]
        %v809 = vld [vmem:[%s3 + $0x20] sm:$0xff]
        %v810 = vld [vmem:[%s3 + $0x28] sm:$0xff]
        %v811 = vld [vmem:[%s3 + $0x30] sm:$0xff]
        %v812 = vld [vmem:[%s3 + $0x38] sm:$0xff]
        %v813 = vld [vmem:[%s1] sm:$0xff]
        %v814 = vld [vmem:[%s1 + $0x8] sm:$0xff]
        %v815 = vld [vmem:[%s1 + $0x10] sm:$0xff]
        %v816 = vld [vmem:[%s1 + $0x18] sm:$0xff]
        %v817 = vld [vmem:[%s1 + $0x20] sm:$0xff]
        %v818 = vld [vmem:[%s1 + $0x28] sm:$0xff]
        %v819 = vld [vmem:[%s1 + $0x30] sm:$0xff]
        %v820 = vld [vmem:[%s1 + $0x38] sm:$0xff]
        %v821 = vld [vmem:[#allocation5] sm:$0xf]
        %v822 = vld [vmem:[%s7] sm:$0xff]
        %v823 = vld [vmem:[%s7 + $0x8] sm:$0xff]
        %v824 = vld [vmem:[%s7 + $0x10] sm:$0xff]
        %v825 = vld [vmem:[%s7 + $0x18] sm:$0xff]
        %v826 = vld [vmem:[%s7 + $0x20] sm:$0xff]
        %v827 = vld [vmem:[%s7 + $0x28] sm:$0xff]
        %v828 = vld [vmem:[%s7 + $0x30] sm:$0xff]
        %v829 = vld [vmem:[%s7 + $0x38] sm:$0xff]
        %v830 = vld [vmem:[%s8] sm:$0x1]
        %v832 = vlaneseq
        %v833 = vshrl.u32 %v832, 7
        %v834 = vsub.s32 0, %v833
        %v835 = vrot.slane %v830, %v834
        %vm837 = vcmask 523264
        %v839 = vsel %vm837, %v805, 0
        %v842 = vsel %vm837, %v806, 0
        %v845 = vsel %vm837, %v807, 0
        %v848 = vsel %vm837, %v808, 0
        %v851 = vsel %vm837, %v809, 0
        %v854 = vsel %vm837, %v810, 0
        %v857 = vsel %vm837, %v811, 0
        %v860 = vsel %vm837, %v812, 0
        %862 = vmatprep.subr.mxu0 0.0
        %863 = vmatpush1.msra.mxu0 %v822
        %864 = vmatprep.subr.mxu0 0.0
        %865 = vmatpush1.msra.mxu0 %v823
        %866 = vmatprep.subr.mxu0 0.0
        %867 = vmatpush1.msra.mxu0 %v824
        %868 = vmatprep.subr.mxu0 0.0
        %869 = vmatpush1.msra.mxu0 %v825
        %870 = vmatprep.subr.mxu0 0.0
        %871 = vmatpush1.msra.mxu0 %v826
        %872 = vmatprep.subr.mxu0 0.0
        %873 = vmatpush1.msra.mxu0 %v827
        %874 = vmatprep.subr.mxu0 0.0
        %875 = vmatpush1.msra.mxu0 %v828
        %876 = vmatprep.subr.mxu0 0.0
        %877 = vmatpush1.msra.mxu0 %v829
        %878 = vmatprep.subr.mxu0 0.0
        %879 = vmatpush1.msra.mxu0 0.0
        %880 = vmatprep.subr.mxu0 0.0
        %881 = vmatpush1.msra.mxu0 0.0
        %882 = vmatprep.subr.mxu0 0.0
        %883 = vmatpush1.msra.mxu0 0.0
        %884 = vmatprep.subr.mxu0 0.0
        %885 = vmatpush1.msra.mxu0 0.0
        %886 = vmatprep.subr.mxu0 0.0
        %887 = vmatpush1.msra.mxu0 0.0
        %888 = vmatprep.subr.mxu0 0.0
        %889 = vmatpush1.msra.mxu0 0.0
        %890 = vmatprep.subr.mxu0 0.0
        %891 = vmatpush1.msra.mxu0 0.0
        %892 = vmatprep.subr.mxu0 0.0
        %893 = vmatpush1.msra.mxu0 0.0
        %894 = vmatprep.subr.mxu0 0.0
        %895 = vmatpush1.msra.mxu0 0.0
        %896 = vmatprep.subr.mxu0 0.0
        %897 = vmatpush1.msra.mxu0 0.0
        %898 = vmatprep.subr.mxu0 0.0
        %899 = vmatpush1.msra.mxu0 0.0
        %900 = vmatprep.subr.mxu0 0.0
        %901 = vmatpush1.msra.mxu0 0.0
        %902 = vmatprep.subr.mxu0 0.0
        %903 = vmatpush1.msra.mxu0 0.0
        %904 = vmatprep.subr.mxu0 0.0
        %905 = vmatpush1.msra.mxu0 0.0
        %906 = vmatprep.subr.mxu0 0.0
        %907 = vmatpush1.msra.mxu0 0.0
        %908 = vmatprep.subr.mxu0 0.0
        %909 = vmatpush1.msra.mxu0 0.0
        %910 = vmatprep.subr.mxu0 0.0
        %911 = vmatpush1.msra.mxu0 0.0
        %912 = vmatprep.subr.mxu0 0.0
        %913 = vmatpush1.msra.mxu0 0.0
        %914 = vmatprep.subr.mxu0 0.0
        %915 = vmatpush1.msra.mxu0 0.0
        %916 = vmatprep.subr.mxu0 0.0
        %917 = vmatpush1.msra.mxu0 0.0
        %918 = vmatprep.subr.mxu0 0.0
        %919 = vmatpush1.msra.mxu0 0.0
        %920 = vmatprep.subr.mxu0 0.0
        %921 = vmatpush1.msra.mxu0 0.0
        %922 = vmatprep.subr.mxu0 0.0
        %923 = vmatpush1.msra.mxu0 0.0
        %924 = vmatprep.subr.mxu0 0.0
        %925 = vmatpush1.msra.mxu0 0.0
        %926 = vmatprep.mubr.f32.mxu0 0.0
        %927 = vmatmul.mubr.f32.gmra.mrb[0].mxu0 %v839
        %v928 = vpop.f32.mrb[0].mxu0
        %v929 = vadd.f32 %v835, %v928
        %v930 = vpop.f32.mrb[0].mxu0
        %931 = vmatprep.mubr.f32.mxu0 0.0
        %932 = vmatmul.mubr.f32.gmra.mrb[0].mxu0 %v842
        %v933 = vpop.f32.mrb[0].mxu0
        %v934 = vadd.f32 %v835, %v933
        %v935 = vpop.f32.mrb[0].mxu0
        %936 = vmatprep.mubr.f32.mxu0 0.0
        %937 = vmatmul.mubr.f32.gmra.mrb[0].mxu0 %v845
        %v938 = vpop.f32.mrb[0].mxu0
        %v939 = vadd.f32 %v835, %v938
        %v940 = vpop.f32.mrb[0].mxu0
        %941 = vmatprep.mubr.f32.mxu0 0.0
        %942 = vmatmul.mubr.f32.gmra.mrb[0].mxu0 %v848
        %v943 = vpop.f32.mrb[0].mxu0
        %v944 = vadd.f32 %v835, %v943
        %v945 = vpop.f32.mrb[0].mxu0
        %946 = vmatprep.mubr.f32.mxu0 0.0
        %947 = vmatmul.mubr.f32.gmra.mrb[0].mxu0 %v851
        %v948 = vpop.f32.mrb[0].mxu0
        %v949 = vadd.f32 %v835, %v948
        %v950 = vpop.f32.mrb[0].mxu0
        %951 = vmatprep.mubr.f32.mxu0 0.0
        %952 = vmatmul.mubr.f32.gmra.mrb[0].mxu0 %v854
        %v953 = vpop.f32.mrb[0].mxu0
        %v954 = vadd.f32 %v835, %v953
        %v955 = vpop.f32.mrb[0].mxu0
        %956 = vmatprep.mubr.f32.mxu0 0.0
        %957 = vmatmul.mubr.f32.gmra.mrb[0].mxu0 %v857
        %v958 = vpop.f32.mrb[0].mxu0
        %v959 = vadd.f32 %v835, %v958
        %v960 = vpop.f32.mrb[0].mxu0
        %961 = vmatprep.mubr.f32.mxu0 0.0
        %962 = vmatmul.mubr.f32.gmra.mrb[0].mxu0 %v860
        %v963 = vpop.f32.mrb[0].mxu0
        %v964 = vadd.f32 %v835, %v963
        %v965 = vpop.f32.mrb[0].mxu0
        %966 = vdwg.mxu0
        %v967 = vld [vmem:[%s9] sm:$0xff]
        %v968 = vld [vmem:[%s9 + $0x8] sm:$0xff]
        %v969 = vld [vmem:[%s9 + $0x10] sm:$0xff]
        %v970 = vld [vmem:[%s9 + $0x18] sm:$0xff]
        %v971 = vld [vmem:[%s10] sm:$0x1]
        %v973 = vlaneseq
        %v974 = vshrl.u32 %v973, 7
        %v975 = vsub.s32 0, %v974
        %v976 = vrot.slane %v971, %v975
        %vm978 = vcmask 261120
        %v980 = vsel %vm978, %v802, 0
        %982 = vmatprep.subr.mxu0 0.0
        %983 = vmatpush1.msra.mxu0 %v967
        %984 = vmatprep.subr.mxu0 0.0
        %985 = vmatpush1.msra.mxu0 %v968
        %986 = vmatprep.subr.mxu0 0.0
        %987 = vmatpush1.msra.mxu0 %v969
        %988 = vmatprep.subr.mxu0 0.0
        %989 = vmatpush1.msra.mxu0 %v970
        %990 = vmatprep.subr.mxu0 0.0
        %991 = vmatpush1.msra.mxu0 0.0
        %992 = vmatprep.subr.mxu0 0.0
        %993 = vmatpush1.msra.mxu0 0.0
        %994 = vmatprep.subr.mxu0 0.0
        %995 = vmatpush1.msra.mxu0 0.0
        %996 = vmatprep.subr.mxu0 0.0
        %997 = vmatpush1.msra.mxu0 0.0
        %998 = vmatprep.subr.mxu0 0.0
        %999 = vmatpush1.msra.mxu0 0.0
        %1000 = vmatprep.subr.mxu0 0.0
        %1001 = vmatpush1.msra.mxu0 0.0
        %1002 = vmatprep.subr.mxu0 0.0
        %1003 = vmatpush1.msra.mxu0 0.0
        %1004 = vmatprep.subr.mxu0 0.0
        %1005 = vmatpush1.msra.mxu0 0.0
        %1006 = vmatprep.subr.mxu0 0.0
        %1007 = vmatpush1.msra.mxu0 0.0
        %1008 = vmatprep.subr.mxu0 0.0
        %1009 = vmatpush1.msra.mxu0 0.0
        %1010 = vmatprep.subr.mxu0 0.0
        %1011 = vmatpush1.msra.mxu0 0.0
        %1012 = vmatprep.subr.mxu0 0.0
        %1013 = vmatpush1.msra.mxu0 0.0
        %1014 = vmatprep.subr.mxu0 0.0
        %1015 = vmatpush1.msra.mxu0 0.0
        %1016 = vmatprep.subr.mxu0 0.0
        %1017 = vmatpush1.msra.mxu0 0.0
        %1018 = vmatprep.subr.mxu0 0.0
        %1019 = vmatpush1.msra.mxu0 0.0
        %1020 = vmatprep.subr.mxu0 0.0
        %1021 = vmatpush1.msra.mxu0 0.0
        %1022 = vmatprep.subr.mxu0 0.0
        %1023 = vmatpush1.msra.mxu0 0.0
        %1024 = vmatprep.subr.mxu0 0.0
        %1025 = vmatpush1.msra.mxu0 0.0
        %1026 = vmatprep.subr.mxu0 0.0
        %1027 = vmatpush1.msra.mxu0 0.0
        %1028 = vmatprep.subr.mxu0 0.0
        %1029 = vmatpush1.msra.mxu0 0.0
        %1030 = vmatprep.subr.mxu0 0.0
        %1031 = vmatpush1.msra.mxu0 0.0
        %1032 = vmatprep.subr.mxu0 0.0
        %1033 = vmatpush1.msra.mxu0 0.0
        %1034 = vmatprep.subr.mxu0 0.0
        %1035 = vmatpush1.msra.mxu0 0.0
        %1036 = vmatprep.subr.mxu0 0.0
        %1037 = vmatpush1.msra.mxu0 0.0
        %1038 = vmatprep.subr.mxu0 0.0
        %1039 = vmatpush1.msra.mxu0 0.0
        %1040 = vmatprep.subr.mxu0 0.0
        %1041 = vmatpush1.msra.mxu0 0.0
        %1042 = vmatprep.subr.mxu0 0.0
        %1043 = vmatpush1.msra.mxu0 0.0
        %1044 = vmatprep.subr.mxu0 0.0
        %1045 = vmatpush1.msra.mxu0 0.0
        %1046 = vmatprep.mubr.f32.mxu0 0.0
        %1047 = vmatmul.mubr.f32.gmra.mrb[0].mxu0 %v980
        %v1048 = vpop.f32.mrb[0].mxu0
        %v1049 = vadd.f32 %v976, %v1048
        %v1050 = vpop.f32.mrb[0].mxu0
        %1051 = vdwg.mxu0
        %vm1052 = vcmask 31744
        %v1054 = vsel %vm1052, %v813, 0
        %v1057 = vsel %vm1052, %v814, 0
        %v1060 = vsel %vm1052, %v815, 0
        %v1063 = vsel %vm1052, %v816, 0
        %v1066 = vsel %vm1052, %v817, 0
        %v1069 = vsel %vm1052, %v818, 0
        %v1072 = vsel %vm1052, %v819, 0
        %v1075 = vsel %vm1052, %v820, 0
        %vm1077 = vcmask 1043456
        %v1079 = vsel %vm1077, %v1049, 0
        %1081 = vmatprep.subr.mxu0 0.0
        %1082 = vmatpush1.msra.mxu0 %v1079
        %1083 = vmatprep.subr.mxu0 0.0
        %1084 = vmatpush1.msra.mxu0 0.0
        %1085 = vmatprep.subr.mxu0 0.0
        %1086 = vmatpush1.msra.mxu0 0.0
        %1087 = vmatprep.subr.mxu0 0.0
        %1088 = vmatpush1.msra.mxu0 0.0
        %1089 = vmatprep.subr.mxu0 0.0
        %1090 = vmatpush1.msra.mxu0 0.0
        %1091 = vmatprep.subr.mxu0 0.0
        %1092 = vmatpush1.msra.mxu0 0.0
        %1093 = vmatprep.subr.mxu0 0.0
        %1094 = vmatpush1.msra.mxu0 0.0
        %1095 = vmatprep.subr.mxu0 0.0
        %1096 = vmatpush1.msra.mxu0 0.0
        %1097 = vmatprep.subr.mxu0 0.0
        %1098 = vmatpush1.msra.mxu0 0.0
        %1099 = vmatprep.subr.mxu0 0.0
        %1100 = vmatpush1.msra.mxu0 0.0
        %1101 = vmatprep.subr.mxu0 0.0
        %1102 = vmatpush1.msra.mxu0 0.0
        %1103 = vmatprep.subr.mxu0 0.0
        %1104 = vmatpush1.msra.mxu0 0.0
        %1105 = vmatprep.subr.mxu0 0.0
        %1106 = vmatpush1.msra.mxu0 0.0
        %1107 = vmatprep.subr.mxu0 0.0
        %1108 = vmatpush1.msra.mxu0 0.0
        %1109 = vmatprep.subr.mxu0 0.0
        %1110 = vmatpush1.msra.mxu0 0.0
        %1111 = vmatprep.subr.mxu0 0.0
        %1112 = vmatpush1.msra.mxu0 0.0
        %1113 = vmatprep.subr.mxu0 0.0
        %1114 = vmatpush1.msra.mxu0 0.0
        %1115 = vmatprep.subr.mxu0 0.0
        %1116 = vmatpush1.msra.mxu0 0.0
        %1117 = vmatprep.subr.mxu0 0.0
        %1118 = vmatpush1.msra.mxu0 0.0
        %1119 = vmatprep.subr.mxu0 0.0
        %1120 = vmatpush1.msra.mxu0 0.0
        %1121 = vmatprep.subr.mxu0 0.0
        %1122 = vmatpush1.msra.mxu0 0.0
        %1123 = vmatprep.subr.mxu0 0.0
        %1124 = vmatpush1.msra.mxu0 0.0
        %1125 = vmatprep.subr.mxu0 0.0
        %1126 = vmatpush1.msra.mxu0 0.0
        %1127 = vmatprep.subr.mxu0 0.0
        %1128 = vmatpush1.msra.mxu0 0.0
        %1129 = vmatprep.subr.mxu0 0.0
        %1130 = vmatpush1.msra.mxu0 0.0
        %1131 = vmatprep.subr.mxu0 0.0
        %1132 = vmatpush1.msra.mxu0 0.0
        %1133 = vmatprep.subr.mxu0 0.0
        %1134 = vmatpush1.msra.mxu0 0.0
        %1135 = vmatprep.subr.mxu0 0.0
        %1136 = vmatpush1.msra.mxu0 0.0
        %1137 = vmatprep.subr.mxu0 0.0
        %1138 = vmatpush1.msra.mxu0 0.0
        %1139 = vmatprep.subr.mxu0 0.0
        %1140 = vmatpush1.msra.mxu0 0.0
        %1141 = vmatprep.subr.mxu0 0.0
        %1142 = vmatpush1.msra.mxu0 0.0
        %1143 = vmatprep.subr.mxu0 0.0
        %1144 = vmatpush1.msra.mxu0 0.0
        %1145 = vmatprep.mubr.f32.mxu0 0.0
        %1146 = vmatmul.mubr.f32.gmra.mrb[0].mxu0 %v1054
        %v1147 = vpop.f32.mrb[0].mxu0
        %v1148 = vadd.f32 0.0, %v1147
        %v1149 = vpop.f32.mrb[0].mxu0
        %1150 = vmatprep.mubr.f32.mxu0 0.0
        %1151 = vmatmul.mubr.f32.gmra.mrb[0].mxu0 %v1057
        %v1152 = vpop.f32.mrb[0].mxu0
        %v1153 = vadd.f32 0.0, %v1152
        %v1154 = vpop.f32.mrb[0].mxu0
        %1155 = vmatprep.mubr.f32.mxu0 0.0
        %1156 = vmatmul.mubr.f32.gmra.mrb[0].mxu0 %v1060
        %v1157 = vpop.f32.mrb[0].mxu0
        %v1158 = vadd.f32 0.0, %v1157
        %v1159 = vpop.f32.mrb[0].mxu0
        %1160 = vmatprep.mubr.f32.mxu0 0.0
        %1161 = vmatmul.mubr.f32.gmra.mrb[0].mxu0 %v1063
        %v1162 = vpop.f32.mrb[0].mxu0
        %v1163 = vadd.f32 0.0, %v1162
        %v1164 = vpop.f32.mrb[0].mxu0
        %1165 = vmatprep.mubr.f32.mxu0 0.0
        %1166 = vmatmul.mubr.f32.gmra.mrb[0].mxu0 %v1066
        %v1167 = vpop.f32.mrb[0].mxu0
        %v1168 = vadd.f32 0.0, %v1167
        %v1169 = vpop.f32.mrb[0].mxu0
        %1170 = vmatprep.mubr.f32.mxu0 0.0
        %1171 = vmatmul.mubr.f32.gmra.mrb[0].mxu0 %v1069
        %v1172 = vpop.f32.mrb[0].mxu0
        %v1173 = vadd.f32 0.0, %v1172
        %v1174 = vpop.f32.mrb[0].mxu0
        %1175 = vmatprep.mubr.f32.mxu0 0.0
        %1176 = vmatmul.mubr.f32.gmra.mrb[0].mxu0 %v1072
        %v1177 = vpop.f32.mrb[0].mxu0
        %v1178 = vadd.f32 0.0, %v1177
        %v1179 = vpop.f32.mrb[0].mxu0
        %1180 = vmatprep.mubr.f32.mxu0 0.0
        %1181 = vmatmul.mubr.f32.gmra.mrb[0].mxu0 %v1075
        %v1182 = vpop.f32.mrb[0].mxu0
        %v1183 = vadd.f32 0.0, %v1182
        %v1184 = vpop.f32.mrb[0].mxu0
        %1185 = vdwg.mxu0
        %v1186 = vadd.f32 %v929, %v1148
        %v1187 = vadd.f32 %v934, %v1153
        %v1188 = vadd.f32 %v939, %v1158
        %v1189 = vadd.f32 %v944, %v1163
        %v1190 = vadd.f32 %v949, %v1168
        %v1191 = vadd.f32 %v954, %v1173
        %v1192 = vadd.f32 %v959, %v1178
        %v1193 = vadd.f32 %v964, %v1183
        %v1194 = vmax.f32 %v1186, 0.0
        %v1195 = vmax.f32 %v1187, 0.0
        %v1196 = vmax.f32 %v1188, 0.0
        %v1197 = vmax.f32 %v1189, 0.0
        %v1198 = vmax.f32 %v1190, 0.0
        %v1199 = vmax.f32 %v1191, 0.0
        %v1200 = vmax.f32 %v1192, 0.0
        %v1201 = vmax.f32 %v1193, 0.0
        %v1202 = vld [vmem:[%s11] sm:$0xff]
        %v1203 = vld [vmem:[%s11 + $0x8] sm:$0xff]
        %v1204 = vld [vmem:[%s11 + $0x10] sm:$0xff]
        %v1205 = vld [vmem:[%s11 + $0x18] sm:$0xff]
        %v1206 = vld [vmem:[#allocation4] sm:$0x1]
        %v1208 = vlaneseq
        %v1209 = vshrl.u32 %v1208, 7
        %v1210 = vsub.s32 0, %v1209
        %v1211 = vrot.slane %v1206, %v1210
        %v1214 = vsel %vm978, %v1194, 0
        %v1217 = vsel %vm978, %v1195, 0
        %v1220 = vsel %vm978, %v1196, 0
        %v1223 = vsel %vm978, %v1197, 0
        %v1226 = vsel %vm978, %v1198, 0
        %v1229 = vsel %vm978, %v1199, 0
        %v1232 = vsel %vm978, %v1200, 0
        %v1235 = vsel %vm978, %v1201, 0
        %1237 = vmatprep.subr.mxu0 0.0
        %1238 = vmatpush1.msra.mxu0 %v1202
        %1239 = vmatprep.subr.mxu0 0.0
        %1240 = vmatpush1.msra.mxu0 %v1203
        %1241 = vmatprep.subr.mxu0 0.0
        %1242 = vmatpush1.msra.mxu0 %v1204
        %1243 = vmatprep.subr.mxu0 0.0
        %1244 = vmatpush1.msra.mxu0 %v1205
        %1245 = vmatprep.subr.mxu0 0.0
        %1246 = vmatpush1.msra.mxu0 0.0
        %1247 = vmatprep.subr.mxu0 0.0
        %1248 = vmatpush1.msra.mxu0 0.0
        %1249 = vmatprep.subr.mxu0 0.0
        %1250 = vmatpush1.msra.mxu0 0.0
        %1251 = vmatprep.subr.mxu0 0.0
        %1252 = vmatpush1.msra.mxu0 0.0
        %1253 = vmatprep.subr.mxu0 0.0
        %1254 = vmatpush1.msra.mxu0 0.0
        %1255 = vmatprep.subr.mxu0 0.0
        %1256 = vmatpush1.msra.mxu0 0.0
        %1257 = vmatprep.subr.mxu0 0.0
        %1258 = vmatpush1.msra.mxu0 0.0
        %1259 = vmatprep.subr.mxu0 0.0
        %1260 = vmatpush1.msra.mxu0 0.0
        %1261 = vmatprep.subr.mxu0 0.0
        %1262 = vmatpush1.msra.mxu0 0.0
        %1263 = vmatprep.subr.mxu0 0.0
        %1264 = vmatpush1.msra.mxu0 0.0
        %1265 = vmatprep.subr.mxu0 0.0
        %1266 = vmatpush1.msra.mxu0 0.0
        %1267 = vmatprep.subr.mxu0 0.0
        %1268 = vmatpush1.msra.mxu0 0.0
        %1269 = vmatprep.subr.mxu0 0.0
        %1270 = vmatpush1.msra.mxu0 0.0
        %1271 = vmatprep.subr.mxu0 0.0
        %1272 = vmatpush1.msra.mxu0 0.0
        %1273 = vmatprep.subr.mxu0 0.0
        %1274 = vmatpush1.msra.mxu0 0.0
        %1275 = vmatprep.subr.mxu0 0.0
        %1276 = vmatpush1.msra.mxu0 0.0
        %1277 = vmatprep.subr.mxu0 0.0
        %1278 = vmatpush1.msra.mxu0 0.0
        %1279 = vmatprep.subr.mxu0 0.0
        %1280 = vmatpush1.msra.mxu0 0.0
        %1281 = vmatprep.subr.mxu0 0.0
        %1282 = vmatpush1.msra.mxu0 0.0
        %1283 = vmatprep.subr.mxu0 0.0
        %1284 = vmatpush1.msra.mxu0 0.0
        %1285 = vmatprep.subr.mxu0 0.0
        %1286 = vmatpush1.msra.mxu0 0.0
        %1287 = vmatprep.subr.mxu0 0.0
        %1288 = vmatpush1.msra.mxu0 0.0
        %1289 = vmatprep.subr.mxu0 0.0
        %1290 = vmatpush1.msra.mxu0 0.0
        %1291 = vmatprep.subr.mxu0 0.0
        %1292 = vmatpush1.msra.mxu0 0.0
        %1293 = vmatprep.subr.mxu0 0.0
        %1294 = vmatpush1.msra.mxu0 0.0
        %1295 = vmatprep.subr.mxu0 0.0
        %1296 = vmatpush1.msra.mxu0 0.0
        %1297 = vmatprep.subr.mxu0 0.0
        %1298 = vmatpush1.msra.mxu0 0.0
        %1299 = vmatprep.subr.mxu0 0.0
        %1300 = vmatpush1.msra.mxu0 0.0
        %1301 = vmatprep.mubr.f32.mxu0 0.0
        %1302 = vmatmul.mubr.f32.gmra.mrb[0].mxu0 %v1214
        %v1303 = vpop.f32.mrb[0].mxu0
        %v1304 = vadd.f32 %v1211, %v1303
        %v1305 = vpop.f32.mrb[0].mxu0
        %1306 = vmatprep.mubr.f32.mxu0 0.0
        %1307 = vmatmul.mubr.f32.gmra.mrb[0].mxu0 %v1217
        %v1308 = vpop.f32.mrb[0].mxu0
        %v1309 = vadd.f32 %v1211, %v1308
        %v1310 = vpop.f32.mrb[0].mxu0
        %1311 = vmatprep.mubr.f32.mxu0 0.0
        %1312 = vmatmul.mubr.f32.gmra.mrb[0].mxu0 %v1220
        %v1313 = vpop.f32.mrb[0].mxu0
        %v1314 = vadd.f32 %v1211, %v1313
        %v1315 = vpop.f32.mrb[0].mxu0
        %1316 = vmatprep.mubr.f32.mxu0 0.0
        %1317 = vmatmul.mubr.f32.gmra.mrb[0].mxu0 %v1223
        %v1318 = vpop.f32.mrb[0].mxu0
        %v1319 = vadd.f32 %v1211, %v1318
        %v1320 = vpop.f32.mrb[0].mxu0
        %1321 = vmatprep.mubr.f32.mxu0 0.0
        %1322 = vmatmul.mubr.f32.gmra.mrb[0].mxu0 %v1226
        %v1323 = vpop.f32.mrb[0].mxu0
        %v1324 = vadd.f32 %v1211, %v1323
        %v1325 = vpop.f32.mrb[0].mxu0
        %1326 = vmatprep.mubr.f32.mxu0 0.0
        %1327 = vmatmul.mubr.f32.gmra.mrb[0].mxu0 %v1229
        %v1328 = vpop.f32.mrb[0].mxu0
        %v1329 = vadd.f32 %v1211, %v1328
        %v1330 = vpop.f32.mrb[0].mxu0
        %1331 = vmatprep.mubr.f32.mxu0 0.0
        %1332 = vmatmul.mubr.f32.gmra.mrb[0].mxu0 %v1232
        %v1333 = vpop.f32.mrb[0].mxu0
        %v1334 = vadd.f32 %v1211, %v1333
        %v1335 = vpop.f32.mrb[0].mxu0
        %1336 = vmatprep.mubr.f32.mxu0 0.0
        %1337 = vmatmul.mubr.f32.gmra.mrb[0].mxu0 %v1235
        %v1338 = vpop.f32.mrb[0].mxu0
        %v1339 = vadd.f32 %v1211, %v1338
        %v1340 = vpop.f32.mrb[0].mxu0
        %1341 = vdwg.mxu0
        %vm1342 = vcmask 7168
        %v1343 = vsel %vm1342, %v1304, -inf
        %v1344 = vsel %vm1342, %v1309, -inf
        %v1345 = vmax.f32 %v1343, %v1344
        %v1346 = vrot.slane %v1345, 4
        %v1347 = vmax.f32 %v1345, %v1346
        %v1348 = vrot.slane %v1347, 2
        %v1349 = vmax.f32 %v1347, %v1348
        %v1350 = vrot.slane %v1349, 1
        %v1351 = vmax.f32 %v1349, %v1350
        %v1352 = vmul.f32 %v813, %v1351
        %v1353 = vmul.f32 %v814, %v1351
        %v1354 = vmul.f32 %v815, %v1351
        %v1355 = vmul.f32 %v816, %v1351
        %v1356 = vmul.f32 %v817, %v1351
        %v1357 = vmul.f32 %v818, %v1351
        %v1358 = vmul.f32 %v819, %v1351
        %v1359 = vmul.f32 %v820, %v1351
        %v1360 = vadd.f32 %v1352, 0.0
        %v1361 = vadd.f32 %v1353, 0.0
        %v1362 = vadd.f32 %v1354, 0.0
        %v1363 = vadd.f32 %v1355, 0.0
        %v1364 = vadd.f32 %v1356, 0.0
        %v1365 = vadd.f32 %v1357, 0.0
        %v1366 = vadd.f32 %v1358, 0.0
        %v1367 = vadd.f32 %v1359, 0.0
        %v1368 = vsel %vm1342, %v1314, -inf
        %v1369 = vsel %vm1342, %v1319, -inf
        %v1370 = vmax.f32 %v1368, %v1369
        %v1371 = vrot.slane %v1370, 4
        %v1372 = vmax.f32 %v1370, %v1371
        %v1373 = vrot.slane %v1372, 2
        %v1374 = vmax.f32 %v1372, %v1373
        %v1375 = vrot.slane %v1374, 1
        %v1376 = vmax.f32 %v1374, %v1375
        %1378 = vrot.lane.b32.xlu0 %v1376, 1
        %v1379 = vpop.permute.xlu0 %1378
        %v1381 = vmul.f32 %v813, %v1379
        %v1382 = vmul.f32 %v814, %v1379
        %v1383 = vmul.f32 %v815, %v1379
        %v1384 = vmul.f32 %v816, %v1379
        %v1385 = vmul.f32 %v817, %v1379
        %v1386 = vmul.f32 %v818, %v1379
        %v1387 = vmul.f32 %v819, %v1379
        %v1388 = vmul.f32 %v820, %v1379
        %1397 = vrot.lane.b32.xlu0 %v1381, 127
        %v1398 = vpop.permute.xlu0 %1397
        %1399 = vrot.lane.b32.xlu0 %v1382, 127
        %v1400 = vpop.permute.xlu0 %1399
        %1401 = vrot.lane.b32.xlu0 %v1383, 127
        %v1402 = vpop.permute.xlu0 %1401
        %1403 = vrot.lane.b32.xlu0 %v1384, 127
        %v1404 = vpop.permute.xlu0 %1403
        %1405 = vrot.lane.b32.xlu0 %v1385, 127
        %v1406 = vpop.permute.xlu0 %1405
        %1407 = vrot.lane.b32.xlu0 %v1386, 127
        %v1408 = vpop.permute.xlu0 %1407
        %1409 = vrot.lane.b32.xlu0 %v1387, 127
        %v1410 = vpop.permute.xlu0 %1409
        %1411 = vrot.lane.b32.xlu0 %v1388, 127
        %v1412 = vpop.permute.xlu0 %1411
        %v1421 = vadd.f32 %v1360, %v1398
        %v1422 = vadd.f32 %v1361, %v1400
        %v1423 = vadd.f32 %v1362, %v1402
        %v1424 = vadd.f32 %v1363, %v1404
        %v1425 = vadd.f32 %v1364, %v1406
        %v1426 = vadd.f32 %v1365, %v1408
        %v1427 = vadd.f32 %v1366, %v1410
        %v1428 = vadd.f32 %v1367, %v1412
        %v1429 = vsel %vm1342, %v1324, -inf
        %v1430 = vsel %vm1342, %v1329, -inf
        %v1431 = vmax.f32 %v1429, %v1430
        %v1432 = vrot.slane %v1431, 4
        %v1433 = vmax.f32 %v1431, %v1432
        %v1434 = vrot.slane %v1433, 2
        %v1435 = vmax.f32 %v1433, %v1434
        %v1436 = vrot.slane %v1435, 1
        %v1437 = vmax.f32 %v1435, %v1436
        %1439 = vrot.lane.b32.xlu0 %v1437, 2
        %v1440 = vpop.permute.xlu0 %1439
        %v1442 = vmul.f32 %v813, %v1440
        %v1443 = vmul.f32 %v814, %v1440
        %v1444 = vmul.f32 %v815, %v1440
        %v1445 = vmul.f32 %v816, %v1440
        %v1446 = vmul.f32 %v817, %v1440
        %v1447 = vmul.f32 %v818, %v1440
        %v1448 = vmul.f32 %v819, %v1440
        %v1449 = vmul.f32 %v820, %v1440
        %1458 = vrot.lane.b32.xlu0 %v1442, 126
        %v1459 = vpop.permute.xlu0 %1458
        %1460 = vrot.lane.b32.xlu0 %v1443, 126
        %v1461 = vpop.permute.xlu0 %1460
        %1462 = vrot.lane.b32.xlu0 %v1444, 126
        %v1463 = vpop.permute.xlu0 %1462
        %1464 = vrot.lane.b32.xlu0 %v1445, 126
        %v1465 = vpop.permute.xlu0 %1464
        %1466 = vrot.lane.b32.xlu0 %v1446, 126
        %v1467 = vpop.permute.xlu0 %1466
        %1468 = vrot.lane.b32.xlu0 %v1447, 126
        %v1469 = vpop.permute.xlu0 %1468
        %1470 = vrot.lane.b32.xlu0 %v1448, 126
        %v1471 = vpop.permute.xlu0 %1470
        %1472 = vrot.lane.b32.xlu0 %v1449, 126
        %v1473 = vpop.permute.xlu0 %1472
        %v1482 = vadd.f32 %v1421, %v1459
        %v1483 = vadd.f32 %v1422, %v1461
        %v1484 = vadd.f32 %v1423, %v1463
        %v1485 = vadd.f32 %v1424, %v1465
        %v1486 = vadd.f32 %v1425, %v1467
        %v1487 = vadd.f32 %v1426, %v1469
        %v1488 = vadd.f32 %v1427, %v1471
        %v1489 = vadd.f32 %v1428, %v1473
        %v1490 = vsel %vm1342, %v1334, -inf
        %v1491 = vsel %vm1342, %v1339, -inf
        %v1492 = vmax.f32 %v1490, %v1491
        %v1493 = vrot.slane %v1492, 4
        %v1494 = vmax.f32 %v1492, %v1493
        %v1495 = vrot.slane %v1494, 2
        %v1496 = vmax.f32 %v1494, %v1495
        %v1497 = vrot.slane %v1496, 1
        %v1498 = vmax.f32 %v1496, %v1497
        %1500 = vrot.lane.b32.xlu0 %v1498, 3
        %v1501 = vpop.permute.xlu0 %1500
        %v1503 = vmul.f32 %v813, %v1501
        %v1504 = vmul.f32 %v814, %v1501
        %v1505 = vmul.f32 %v815, %v1501
        %v1506 = vmul.f32 %v816, %v1501
        %v1507 = vmul.f32 %v817, %v1501
        %v1508 = vmul.f32 %v818, %v1501
        %v1509 = vmul.f32 %v819, %v1501
        %v1510 = vmul.f32 %v820, %v1501
        %1519 = vrot.lane.b32.xlu0 %v1503, 125
        %v1520 = vpop.permute.xlu0 %1519
        %1521 = vrot.lane.b32.xlu0 %v1504, 125
        %v1522 = vpop.permute.xlu0 %1521
        %1523 = vrot.lane.b32.xlu0 %v1505, 125
        %v1524 = vpop.permute.xlu0 %1523
        %1525 = vrot.lane.b32.xlu0 %v1506, 125
        %v1526 = vpop.permute.xlu0 %1525
        %1527 = vrot.lane.b32.xlu0 %v1507, 125
        %v1528 = vpop.permute.xlu0 %1527
        %1529 = vrot.lane.b32.xlu0 %v1508, 125
        %v1530 = vpop.permute.xlu0 %1529
        %1531 = vrot.lane.b32.xlu0 %v1509, 125
        %v1532 = vpop.permute.xlu0 %1531
        %1533 = vrot.lane.b32.xlu0 %v1510, 125
        %v1534 = vpop.permute.xlu0 %1533
        %v1543 = vadd.f32 %v1482, %v1520
        %v1544 = vadd.f32 %v1483, %v1522
        %v1545 = vadd.f32 %v1484, %v1524
        %v1546 = vadd.f32 %v1485, %v1526
        %v1547 = vadd.f32 %v1486, %v1528
        %v1548 = vadd.f32 %v1487, %v1530
        %v1549 = vadd.f32 %v1488, %v1532
        %v1550 = vadd.f32 %v1489, %v1534
        %v1551 = vsub.f32 %v1304, %v1543
        %v1552 = vsub.f32 %v1309, %v1544
        %v1553 = vsub.f32 %v1314, %v1545
        %v1554 = vsub.f32 %v1319, %v1546
        %v1555 = vsub.f32 %v1324, %v1547
        %v1556 = vsub.f32 %v1329, %v1548
        %v1557 = vsub.f32 %v1334, %v1549
        %v1558 = vsub.f32 %v1339, %v1550
        %v1559 = vmul.f32 %v1551, 1.442695
        %v1560 = vpow.pop %v1559
        %v1561 = vmul.f32 %v1552, 1.442695
        %v1562 = vpow.pop %v1561
        %v1563 = vmul.f32 %v1553, 1.442695
        %v1564 = vpow.pop %v1563
        %v1565 = vmul.f32 %v1554, 1.442695
        %v1566 = vpow.pop %v1565
        %v1567 = vmul.f32 %v1555, 1.442695
        %v1568 = vpow.pop %v1567
        %v1569 = vmul.f32 %v1556, 1.442695
        %v1570 = vpow.pop %v1569
        %v1571 = vmul.f32 %v1557, 1.442695
        %v1572 = vpow.pop %v1571
        %v1573 = vmul.f32 %v1558, 1.442695
        %v1574 = vpow.pop %v1573
        %v1576 = vsel %vm837, %v821, 0
        %1578 = vmatprep.subr.mxu0 0.0
        %1579 = vmatpush1.msra.mxu0 %v1560
        %1580 = vmatprep.subr.mxu0 0.0
        %1581 = vmatpush1.msra.mxu0 %v1562
        %1582 = vmatprep.subr.mxu0 0.0
        %1583 = vmatpush1.msra.mxu0 %v1564
        %1584 = vmatprep.subr.mxu0 0.0
        %1585 = vmatpush1.msra.mxu0 %v1566
        %1586 = vmatprep.subr.mxu0 0.0
        %1587 = vmatpush1.msra.mxu0 %v1568
        %1588 = vmatprep.subr.mxu0 0.0
        %1589 = vmatpush1.msra.mxu0 %v1570
        %1590 = vmatprep.subr.mxu0 0.0
        %1591 = vmatpush1.msra.mxu0 %v1572
        %1592 = vmatprep.subr.mxu0 0.0
        %1593 = vmatpush1.msra.mxu0 %v1574
        %1594 = vmatprep.subr.mxu0 0.0
        %1595 = vmatpush1.msra.mxu0 0.0
        %1596 = vmatprep.subr.mxu0 0.0
        %1597 = vmatpush1.msra.mxu0 0.0
        %1598 = vmatprep.subr.mxu0 0.0
        %1599 = vmatpush1.msra.mxu0 0.0
        %1600 = vmatprep.subr.mxu0 0.0
        %1601 = vmatpush1.msra.mxu0 0.0
        %1602 = vmatprep.subr.mxu0 0.0
        %1603 = vmatpush1.msra.mxu0 0.0
        %1604 = vmatprep.subr.mxu0 0.0
        %1605 = vmatpush1.msra.mxu0 0.0
        %1606 = vmatprep.subr.mxu0 0.0
        %1607 = vmatpush1.msra.mxu0 0.0
        %1608 = vmatprep.subr.mxu0 0.0
        %1609 = vmatpush1.msra.mxu0 0.0
        %1610 = vmatprep.subr.mxu0 0.0
        %1611 = vmatpush1.msra.mxu0 0.0
        %1612 = vmatprep.subr.mxu0 0.0
        %1613 = vmatpush1.msra.mxu0 0.0
        %1614 = vmatprep.subr.mxu0 0.0
        %1615 = vmatpush1.msra.mxu0 0.0
        %1616 = vmatprep.subr.mxu0 0.0
        %1617 = vmatpush1.msra.mxu0 0.0
        %1618 = vmatprep.subr.mxu0 0.0
        %1619 = vmatpush1.msra.mxu0 0.0
        %1620 = vmatprep.subr.mxu0 0.0
        %1621 = vmatpush1.msra.mxu0 0.0
        %1622 = vmatprep.subr.mxu0 0.0
        %1623 = vmatpush1.msra.mxu0 0.0
        %1624 = vmatprep.subr.mxu0 0.0
        %1625 = vmatpush1.msra.mxu0 0.0
        %1626 = vmatprep.subr.mxu0 0.0
        %1627 = vmatpush1.msra.mxu0 0.0
        %1628 = vmatprep.subr.mxu0 0.0
        %1629 = vmatpush1.msra.mxu0 0.0
        %1630 = vmatprep.subr.mxu0 0.0
        %1631 = vmatpush1.msra.mxu0 0.0
        %1632 = vmatprep.subr.mxu0 0.0
        %1633 = vmatpush1.msra.mxu0 0.0
        %1634 = vmatprep.subr.mxu0 0.0
        %1635 = vmatpush1.msra.mxu0 0.0
        %1636 = vmatprep.subr.mxu0 0.0
        %1637 = vmatpush1.msra.mxu0 0.0
        %1638 = vmatprep.subr.mxu0 0.0
        %1639 = vmatpush1.msra.mxu0 0.0
        %1640 = vmatprep.subr.mxu0 0.0
        %1641 = vmatpush1.msra.mxu0 0.0
        %1642 = vmatprep.mubr.f32.mxu0 0.0
        %1643 = vmatmul.mubr.f32.gmra.mrb[0].mxu0 %v1576
        %v1644 = vpop.f32.mrb[0].mxu0
        %v1645 = vadd.f32 0.0, %v1644
        %v1646 = vpop.f32.mrb[0].mxu0
        %1647 = vdwg.mxu0
        %v1648 = vrcp.pop %v1645
        %v1650 = vsel %vm1077, %v1648, 0
        %1652 = vmatprep.subr.mxu0 0.0
        %1653 = vmatpush1.msra.mxu0 %v1650
        %1654 = vmatprep.subr.mxu0 0.0
        %1655 = vmatpush1.msra.mxu0 0.0
        %1656 = vmatprep.subr.mxu0 0.0
        %1657 = vmatpush1.msra.mxu0 0.0
        %1658 = vmatprep.subr.mxu0 0.0
        %1659 = vmatpush1.msra.mxu0 0.0
        %1660 = vmatprep.subr.mxu0 0.0
        %1661 = vmatpush1.msra.mxu0 0.0
        %1662 = vmatprep.subr.mxu0 0.0
        %1663 = vmatpush1.msra.mxu0 0.0
        %1664 = vmatprep.subr.mxu0 0.0
        %1665 = vmatpush1.msra.mxu0 0.0
        %1666 = vmatprep.subr.mxu0 0.0
        %1667 = vmatpush1.msra.mxu0 0.0
        %1668 = vmatprep.subr.mxu0 0.0
        %1669 = vmatpush1.msra.mxu0 0.0
        %1670 = vmatprep.subr.mxu0 0.0
        %1671 = vmatpush1.msra.mxu0 0.0
        %1672 = vmatprep.subr.mxu0 0.0
        %1673 = vmatpush1.msra.mxu0 0.0
        %1674 = vmatprep.subr.mxu0 0.0
        %1675 = vmatpush1.msra.mxu0 0.0
        %1676 = vmatprep.subr.mxu0 0.0
        %1677 = vmatpush1.msra.mxu0 0.0
        %1678 = vmatprep.subr.mxu0 0.0
        %1679 = vmatpush1.msra.mxu0 0.0
        %1680 = vmatprep.subr.mxu0 0.0
        %1681 = vmatpush1.msra.mxu0 0.0
        %1682 = vmatprep.subr.mxu0 0.0
        %1683 = vmatpush1.msra.mxu0 0.0
        %1684 = vmatprep.subr.mxu0 0.0
        %1685 = vmatpush1.msra.mxu0 0.0
        %1686 = vmatprep.subr.mxu0 0.0
        %1687 = vmatpush1.msra.mxu0 0.0
        %1688 = vmatprep.subr.mxu0 0.0
        %1689 = vmatpush1.msra.mxu0 0.0
        %1690 = vmatprep.subr.mxu0 0.0
        %1691 = vmatpush1.msra.mxu0 0.0
        %1692 = vmatprep.subr.mxu0 0.0
        %1693 = vmatpush1.msra.mxu0 0.0
        %1694 = vmatprep.subr.mxu0 0.0
        %1695 = vmatpush1.msra.mxu0 0.0
        %1696 = vmatprep.subr.mxu0 0.0
        %1697 = vmatpush1.msra.mxu0 0.0
        %1698 = vmatprep.subr.mxu0 0.0
        %1699 = vmatpush1.msra.mxu0 0.0
        %1700 = vmatprep.subr.mxu0 0.0
        %1701 = vmatpush1.msra.mxu0 0.0
        %1702 = vmatprep.subr.mxu0 0.0
        %1703 = vmatpush1.msra.mxu0 0.0
        %1704 = vmatprep.subr.mxu0 0.0
        %1705 = vmatpush1.msra.mxu0 0.0
        %1706 = vmatprep.subr.mxu0 0.0
        %1707 = vmatpush1.msra.mxu0 0.0
        %1708 = vmatprep.subr.mxu0 0.0
        %1709 = vmatpush1.msra.mxu0 0.0
        %1710 = vmatprep.subr.mxu0 0.0
        %1711 = vmatpush1.msra.mxu0 0.0
        %1712 = vmatprep.subr.mxu0 0.0
        %1713 = vmatpush1.msra.mxu0 0.0
        %1714 = vmatprep.subr.mxu0 0.0
        %1715 = vmatpush1.msra.mxu0 0.0
        %1716 = vmatprep.mubr.f32.mxu0 0.0
        %1717 = vmatmul.mubr.f32.gmra.mrb[0].mxu0 %v1054
        %v1718 = vpop.f32.mrb[0].mxu0
        %v1719 = vadd.f32 0.0, %v1718
        %v1720 = vpop.f32.mrb[0].mxu0
        %1721 = vmatprep.mubr.f32.mxu0 0.0
        %1722 = vmatmul.mubr.f32.gmra.mrb[0].mxu0 %v1057
        %v1723 = vpop.f32.mrb[0].mxu0
        %v1724 = vadd.f32 0.0, %v1723
        %v1725 = vpop.f32.mrb[0].mxu0
        %1726 = vmatprep.mubr.f32.mxu0 0.0
        %1727 = vmatmul.mubr.f32.gmra.mrb[0].mxu0 %v1060
        %v1728 = vpop.f32.mrb[0].mxu0
        %v1729 = vadd.f32 0.0, %v1728
        %v1730 = vpop.f32.mrb[0].mxu0
        %1731 = vmatprep.mubr.f32.mxu0 0.0
        %1732 = vmatmul.mubr.f32.gmra.mrb[0].mxu0 %v1063
        %v1733 = vpop.f32.mrb[0].mxu0
        %v1734 = vadd.f32 0.0, %v1733
        %v1735 = vpop.f32.mrb[0].mxu0
        %1736 = vmatprep.mubr.f32.mxu0 0.0
        %1737 = vmatmul.mubr.f32.gmra.mrb[0].mxu0 %v1066
        %v1738 = vpop.f32.mrb[0].mxu0
        %v1739 = vadd.f32 0.0, %v1738
        %v1740 = vpop.f32.mrb[0].mxu0
        %1741 = vmatprep.mubr.f32.mxu0 0.0
        %1742 = vmatmul.mubr.f32.gmra.mrb[0].mxu0 %v1069
        %v1743 = vpop.f32.mrb[0].mxu0
        %v1744 = vadd.f32 0.0, %v1743
        %v1745 = vpop.f32.mrb[0].mxu0
        %1746 = vmatprep.mubr.f32.mxu0 0.0
        %1747 = vmatmul.mubr.f32.gmra.mrb[0].mxu0 %v1072
        %v1748 = vpop.f32.mrb[0].mxu0
        %v1749 = vadd.f32 0.0, %v1748
        %v1750 = vpop.f32.mrb[0].mxu0
        %1751 = vmatprep.mubr.f32.mxu0 0.0
        %1752 = vmatmul.mubr.f32.gmra.mrb[0].mxu0 %v1075
        %v1753 = vpop.f32.mrb[0].mxu0
        %v1754 = vadd.f32 0.0, %v1753
        %v1755 = vpop.f32.mrb[0].mxu0
        %1756 = vdwg.mxu0
        %v1757 = vmul.f32 %v1560, %v1719
        %v1758 = vmul.f32 %v1562, %v1724
        %v1759 = vmul.f32 %v1564, %v1729
        %v1760 = vmul.f32 %v1566, %v1734
        %v1761 = vmul.f32 %v1568, %v1739
        %v1762 = vmul.f32 %v1570, %v1744
        %v1763 = vmul.f32 %v1572, %v1749
        %v1764 = vmul.f32 %v1574, %v1754
        %1766 = vset.pattern.permute.xlu0 0
        %1767 = vperm.xlu0 %1766, %v1757
        %v1768 = vpop.permute.xlu0 %1767
        %1771 = vset.pattern.permute.xlu0 0
        %1772 = vperm.xlu0 %1771, %v1758
        %v1773 = vpop.permute.xlu0 %1772
        %1776 = vset.pattern.permute.xlu0 0
        %1777 = vperm.xlu0 %1776, %v1759
        %v1778 = vpop.permute.xlu0 %1777
        %1781 = vset.pattern.permute.xlu0 0
        %1782 = vperm.xlu0 %1781, %v1760
        %v1783 = vpop.permute.xlu0 %1782
        %1786 = vset.pattern.permute.xlu0 0
        %1787 = vperm.xlu0 %1786, %v1761
        %v1788 = vpop.permute.xlu0 %1787
        %1791 = vset.pattern.permute.xlu0 0
        %1792 = vperm.xlu0 %1791, %v1762
        %v1793 = vpop.permute.xlu0 %1792
        %1796 = vset.pattern.permute.xlu0 0
        %1797 = vperm.xlu0 %1796, %v1763
        %v1798 = vpop.permute.xlu0 %1797
        %1801 = vset.pattern.permute.xlu0 0
        %1802 = vperm.xlu0 %1801, %v1764
        %v1803 = vpop.permute.xlu0 %1802
        %v1805 = vmul.f32 %v805, %v1768
        %v1806 = vmul.f32 %v806, %v1773
        %v1807 = vmul.f32 %v807, %v1778
        %v1808 = vmul.f32 %v808, %v1783
        %v1809 = vmul.f32 %v809, %v1788
        %v1810 = vmul.f32 %v810, %v1793
        %v1811 = vmul.f32 %v811, %v1798
        %v1812 = vmul.f32 %v812, %v1803
        %1813 = vmatprep.subr.mxu0 0.0
        %1814 = vmatpush1.msra.mxu0 %v1805
        %1815 = vmatprep.subr.mxu0 0.0
        %1816 = vmatpush1.msra.mxu0 %v1806
        %1817 = vmatprep.subr.mxu0 0.0
        %1818 = vmatpush1.msra.mxu0 %v1807
        %1819 = vmatprep.subr.mxu0 0.0
        %1820 = vmatpush1.msra.mxu0 %v1808
        %1821 = vmatprep.subr.mxu0 0.0
        %1822 = vmatpush1.msra.mxu0 %v1809
        %1823 = vmatprep.subr.mxu0 0.0
        %1824 = vmatpush1.msra.mxu0 %v1810
        %1825 = vmatprep.subr.mxu0 0.0
        %1826 = vmatpush1.msra.mxu0 %v1811
        %1827 = vmatprep.subr.mxu0 0.0
        %1828 = vmatpush1.msra.mxu0 %v1812
        %1829 = vmatprep.subr.mxu0 0.0
        %1830 = vmatpush1.msra.mxu0 0.0
        %1831 = vmatprep.subr.mxu0 0.0
        %1832 = vmatpush1.msra.mxu0 0.0
        %1833 = vmatprep.subr.mxu0 0.0
        %1834 = vmatpush1.msra.mxu0 0.0
        %1835 = vmatprep.subr.mxu0 0.0
        %1836 = vmatpush1.msra.mxu0 0.0
        %1837 = vmatprep.subr.mxu0 0.0
        %1838 = vmatpush1.msra.mxu0 0.0
        %1839 = vmatprep.subr.mxu0 0.0
        %1840 = vmatpush1.msra.mxu0 0.0
        %1841 = vmatprep.subr.mxu0 0.0
        %1842 = vmatpush1.msra.mxu0 0.0
        %1843 = vmatprep.subr.mxu0 0.0
        %1844 = vmatpush1.msra.mxu0 0.0
        %1845 = vmatprep.subr.mxu0 0.0
        %1846 = vmatpush1.msra.mxu0 0.0
        %1847 = vmatprep.subr.mxu0 0.0
        %1848 = vmatpush1.msra.mxu0 0.0
        %1849 = vmatprep.subr.mxu0 0.0
        %1850 = vmatpush1.msra.mxu0 0.0
        %1851 = vmatprep.subr.mxu0 0.0
        %1852 = vmatpush1.msra.mxu0 0.0
        %1853 = vmatprep.subr.mxu0 0.0
        %1854 = vmatpush1.msra.mxu0 0.0
        %1855 = vmatprep.subr.mxu0 0.0
        %1856 = vmatpush1.msra.mxu0 0.0
        %1857 = vmatprep.subr.mxu0 0.0
        %1858 = vmatpush1.msra.mxu0 0.0
        %1859 = vmatprep.subr.mxu0 0.0
        %1860 = vmatpush1.msra.mxu0 0.0
        %1861 = vmatprep.subr.mxu0 0.0
        %1862 = vmatpush1.msra.mxu0 0.0
        %1863 = vmatprep.subr.mxu0 0.0
        %1864 = vmatpush1.msra.mxu0 0.0
        %1865 = vmatprep.subr.mxu0 0.0
        %1866 = vmatpush1.msra.mxu0 0.0
        %1867 = vmatprep.subr.mxu0 0.0
        %1868 = vmatpush1.msra.mxu0 0.0
        %1869 = vmatprep.subr.mxu0 0.0
        %1870 = vmatpush1.msra.mxu0 0.0
        %1871 = vmatprep.subr.mxu0 0.0
        %1872 = vmatpush1.msra.mxu0 0.0
        %1873 = vmatprep.subr.mxu0 0.0
        %1874 = vmatpush1.msra.mxu0 0.0
        %1875 = vmatprep.subr.mxu0 0.0
        %1876 = vmatpush1.msra.mxu0 0.0
        %1877 = vmatprep.mubr.f32.mxu0 0.0
        %1878 = vmatmul.mubr.f32.gmra.mrb[0].mxu0 %v1576
        %v1879 = vpop.f32.mrb[0].mxu0
        %v1880 = vadd.f32 0.0, %v1879
        %v1881 = vpop.f32.mrb[0].mxu0
        %1882 = vdwg.mxu0
        %v1883 = vld [vmem:[%s13] sm:$0xff]
        %v1884 = vld [vmem:[%s13 + $0x8] sm:$0xff]
        %v1885 = vld [vmem:[%s13 + $0x10] sm:$0xff]
        %v1886 = vld [vmem:[%s13 + $0x18] sm:$0xff]
        %v1887 = vld [vmem:[#allocation13] sm:$0x1]
        %v1889 = vlaneseq
        %v1890 = vshrl.u32 %v1889, 7
        %v1891 = vsub.s32 0, %v1890
        %v1892 = vrot.slane %v1887, %v1891
        %1894 = vmatprep.subr.mxu0 0.0
        %1895 = vmatpush1.msra.mxu0 %v1883
        %1896 = vmatprep.subr.mxu0 0.0
        %1897 = vmatpush1.msra.mxu0 %v1884
        %1898 = vmatprep.subr.mxu0 0.0
        %1899 = vmatpush1.msra.mxu0 %v1885
        %1900 = vmatprep.subr.mxu0 0.0
        %1901 = vmatpush1.msra.mxu0 %v1886
        %1902 = vmatprep.subr.mxu0 0.0
        %1903 = vmatpush1.msra.mxu0 0.0
        %1904 = vmatprep.subr.mxu0 0.0
        %1905 = vmatpush1.msra.mxu0 0.0
        %1906 = vmatprep.subr.mxu0 0.0
        %1907 = vmatpush1.msra.mxu0 0.0
        %1908 = vmatprep.subr.mxu0 0.0
        %1909 = vmatpush1.msra.mxu0 0.0
        %1910 = vmatprep.subr.mxu0 0.0
        %1911 = vmatpush1.msra.mxu0 0.0
        %1912 = vmatprep.subr.mxu0 0.0
        %1913 = vmatpush1.msra.mxu0 0.0
        %1914 = vmatprep.subr.mxu0 0.0
        %1915 = vmatpush1.msra.mxu0 0.0
        %1916 = vmatprep.subr.mxu0 0.0
        %1917 = vmatpush1.msra.mxu0 0.0
        %1918 = vmatprep.subr.mxu0 0.0
        %1919 = vmatpush1.msra.mxu0 0.0
        %1920 = vmatprep.subr.mxu0 0.0
        %1921 = vmatpush1.msra.mxu0 0.0
        %1922 = vmatprep.subr.mxu0 0.0
        %1923 = vmatpush1.msra.mxu0 0.0
        %1924 = vmatprep.subr.mxu0 0.0
        %1925 = vmatpush1.msra.mxu0 0.0
        %1926 = vmatprep.subr.mxu0 0.0
        %1927 = vmatpush1.msra.mxu0 0.0
        %1928 = vmatprep.subr.mxu0 0.0
        %1929 = vmatpush1.msra.mxu0 0.0
        %1930 = vmatprep.subr.mxu0 0.0
        %1931 = vmatpush1.msra.mxu0 0.0
        %1932 = vmatprep.subr.mxu0 0.0
        %1933 = vmatpush1.msra.mxu0 0.0
        %1934 = vmatprep.subr.mxu0 0.0
        %1935 = vmatpush1.msra.mxu0 0.0
        %1936 = vmatprep.subr.mxu0 0.0
        %1937 = vmatpush1.msra.mxu0 0.0
        %1938 = vmatprep.subr.mxu0 0.0
        %1939 = vmatpush1.msra.mxu0 0.0
        %1940 = vmatprep.subr.mxu0 0.0
        %1941 = vmatpush1.msra.mxu0 0.0
        %1942 = vmatprep.subr.mxu0 0.0
        %1943 = vmatpush1.msra.mxu0 0.0
        %1944 = vmatprep.subr.mxu0 0.0
        %1945 = vmatpush1.msra.mxu0 0.0
        %1946 = vmatprep.subr.mxu0 0.0
        %1947 = vmatpush1.msra.mxu0 0.0
        %1948 = vmatprep.subr.mxu0 0.0
        %1949 = vmatpush1.msra.mxu0 0.0
        %1950 = vmatprep.subr.mxu0 0.0
        %1951 = vmatpush1.msra.mxu0 0.0
        %1952 = vmatprep.subr.mxu0 0.0
        %1953 = vmatpush1.msra.mxu0 0.0
        %1954 = vmatprep.subr.mxu0 0.0
        %1955 = vmatpush1.msra.mxu0 0.0
        %1956 = vmatprep.subr.mxu0 0.0
        %1957 = vmatpush1.msra.mxu0 0.0
        %1958 = vmatprep.mubr.f32.mxu0 0.0
        %1959 = vmatmul.mubr.f32.gmra.mrb[0].mxu0 %v980
        %v1960 = vpop.f32.mrb[0].mxu0
        %v1961 = vadd.f32 %v1892, %v1960
        %v1962 = vpop.f32.mrb[0].mxu0
        %1963 = vdwg.mxu0
        %v1964 = vxor.u32 %v1961, 2147483648
        %v1965 = vmul.f32 %v1964, 1.442695
        %v1966 = vpow.pop %v1965
        %v1967 = vadd.f32 %v1966, 1.0
        %v1968 = vrcp.pop %v1967
        %v1969 = vmul.f32 1.0, %v1968
        %v1970 = vmul.f32 %v1969, %v1880
        %v1971 = vld [vmem:[%s15] sm:$0xff]
        %v1972 = vld [vmem:[%s15 + $0x8] sm:$0xff]
        %v1973 = vld [vmem:[%s15 + $0x10] sm:$0xff]
        %v1974 = vld [vmem:[%s15 + $0x18] sm:$0xff]
        %v1975 = vld [vmem:[%s16] sm:$0xff]
        %v1976 = vld [vmem:[%s16 + $0x8] sm:$0xff]
        %v1977 = vld [vmem:[%s16 + $0x10] sm:$0xff]
        %v1978 = vld [vmem:[%s16 + $0x18] sm:$0xff]
        %v1979 = vld [vmem:[%s16 + $0x20] sm:$0xff]
        %v1980 = vld [vmem:[%s16 + $0x28] sm:$0xff]
        %v1981 = vld [vmem:[%s16 + $0x30] sm:$0xff]
        %v1982 = vld [vmem:[%s16 + $0x38] sm:$0xff]
        %v1984 = vsel %vm837, %v1970, 0
        %1986 = vmatprep.subr.mxu0 0.0
        %1987 = vmatpush1.msra.mxu0 %v1975
        %1988 = vmatprep.subr.mxu0 0.0
        %1989 = vmatpush1.msra.mxu0 %v1976
        %1990 = vmatprep.subr.mxu0 0.0
        %1991 = vmatpush1.msra.mxu0 %v1977
        %1992 = vmatprep.subr.mxu0 0.0
        %1993 = vmatpush1.msra.mxu0 %v1978
        %1994 = vmatprep.subr.mxu0 0.0
        %1995 = vmatpush1.msra.mxu0 %v1979
        %1996 = vmatprep.subr.mxu0 0.0
        %1997 = vmatpush1.msra.mxu0 %v1980
        %1998 = vmatprep.subr.mxu0 0.0
        %1999 = vmatpush1.msra.mxu0 %v1981
        %2000 = vmatprep.subr.mxu0 0.0
        %2001 = vmatpush1.msra.mxu0 %v1982
        %2002 = vmatprep.subr.mxu0 0.0
        %2003 = vmatpush1.msra.mxu0 0.0
        %2004 = vmatprep.subr.mxu0 0.0
        %2005 = vmatpush1.msra.mxu0 0.0
        %2006 = vmatprep.subr.mxu0 0.0
        %2007 = vmatpush1.msra.mxu0 0.0
        %2008 = vmatprep.subr.mxu0 0.0
        %2009 = vmatpush1.msra.mxu0 0.0
        %2010 = vmatprep.subr.mxu0 0.0
        %2011 = vmatpush1.msra.mxu0 0.0
        %2012 = vmatprep.subr.mxu0 0.0
        %2013 = vmatpush1.msra.mxu0 0.0
        %2014 = vmatprep.subr.mxu0 0.0
        %2015 = vmatpush1.msra.mxu0 0.0
        %2016 = vmatprep.subr.mxu0 0.0
        %2017 = vmatpush1.msra.mxu0 0.0
        %2018 = vmatprep.subr.mxu0 0.0
        %2019 = vmatpush1.msra.mxu0 0.0
        %2020 = vmatprep.subr.mxu0 0.0
        %2021 = vmatpush1.msra.mxu0 0.0
        %2022 = vmatprep.subr.mxu0 0.0
        %2023 = vmatpush1.msra.mxu0 0.0
        %2024 = vmatprep.subr.mxu0 0.0
        %2025 = vmatpush1.msra.mxu0 0.0
        %2026 = vmatprep.subr.mxu0 0.0
        %2027 = vmatpush1.msra.mxu0 0.0
        %2028 = vmatprep.subr.mxu0 0.0
        %2029 = vmatpush1.msra.mxu0 0.0
        %2030 = vmatprep.subr.mxu0 0.0
        %2031 = vmatpush1.msra.mxu0 0.0
        %2032 = vmatprep.subr.mxu0 0.0
        %2033 = vmatpush1.msra.mxu0 0.0
        %2034 = vmatprep.subr.mxu0 0.0
        %2035 = vmatpush1.msra.mxu0 0.0
        %2036 = vmatprep.subr.mxu0 0.0
        %2037 = vmatpush1.msra.mxu0 0.0
        %2038 = vmatprep.subr.mxu0 0.0
        %2039 = vmatpush1.msra.mxu0 0.0
        %2040 = vmatprep.subr.mxu0 0.0
        %2041 = vmatpush1.msra.mxu0 0.0
        %2042 = vmatprep.subr.mxu0 0.0
        %2043 = vmatpush1.msra.mxu0 0.0
        %2044 = vmatprep.subr.mxu0 0.0
        %2045 = vmatpush1.msra.mxu0 0.0
        %2046 = vmatprep.subr.mxu0 0.0
        %2047 = vmatpush1.msra.mxu0 0.0
        %2048 = vmatprep.subr.mxu0 0.0
        %2049 = vmatpush1.msra.mxu0 0.0
        %2050 = vmatprep.mubr.f32.mxu0 0.0
        %2051 = vmatmul.mubr.f32.gmra.mrb[0].mxu0 %v1984
        %v2052 = vpop.f32.mrb[0].mxu0
        %v2053 = vadd.f32 0.0, %v2052
        %v2054 = vpop.f32.mrb[0].mxu0
        %2055 = vdwg.mxu0
        %v2057 = vsel %vm978, %v804, 0
        %2059 = vmatprep.subr.mxu0 0.0
        %2060 = vmatpush1.msra.mxu0 %v1971
        %2061 = vmatprep.subr.mxu0 0.0
        %2062 = vmatpush1.msra.mxu0 %v1972
        %2063 = vmatprep.subr.mxu0 0.0
        %2064 = vmatpush1.msra.mxu0 %v1973
        %2065 = vmatprep.subr.mxu0 0.0
        %2066 = vmatpush1.msra.mxu0 %v1974
        %2067 = vmatprep.subr.mxu0 0.0
        %2068 = vmatpush1.msra.mxu0 0.0
        %2069 = vmatprep.subr.mxu0 0.0
        %2070 = vmatpush1.msra.mxu0 0.0
        %2071 = vmatprep.subr.mxu0 0.0
        %2072 = vmatpush1.msra.mxu0 0.0
        %2073 = vmatprep.subr.mxu0 0.0
        %2074 = vmatpush1.msra.mxu0 0.0
        %2075 = vmatprep.subr.mxu0 0.0
        %2076 = vmatpush1.msra.mxu0 0.0
        %2077 = vmatprep.subr.mxu0 0.0
        %2078 = vmatpush1.msra.mxu0 0.0
        %2079 = vmatprep.subr.mxu0 0.0
        %2080 = vmatpush1.msra.mxu0 0.0
        %2081 = vmatprep.subr.mxu0 0.0
        %2082 = vmatpush1.msra.mxu0 0.0
        %2083 = vmatprep.subr.mxu0 0.0
        %2084 = vmatpush1.msra.mxu0 0.0
        %2085 = vmatprep.subr.mxu0 0.0
        %2086 = vmatpush1.msra.mxu0 0.0
        %2087 = vmatprep.subr.mxu0 0.0
        %2088 = vmatpush1.msra.mxu0 0.0
        %2089 = vmatprep.subr.mxu0 0.0
        %2090 = vmatpush1.msra.mxu0 0.0
        %2091 = vmatprep.subr.mxu0 0.0
        %2092 = vmatpush1.msra.mxu0 0.0
        %2093 = vmatprep.subr.mxu0 0.0
        %2094 = vmatpush1.msra.mxu0 0.0
        %2095 = vmatprep.subr.mxu0 0.0
        %2096 = vmatpush1.msra.mxu0 0.0
        %2097 = vmatprep.subr.mxu0 0.0
        %2098 = vmatpush1.msra.mxu0 0.0
        %2099 = vmatprep.subr.mxu0 0.0
        %2100 = vmatpush1.msra.mxu0 0.0
        %2101 = vmatprep.subr.mxu0 0.0
        %2102 = vmatpush1.msra.mxu0 0.0
        %2103 = vmatprep.subr.mxu0 0.0
        %2104 = vmatpush1.msra.mxu0 0.0
        %2105 = vmatprep.subr.mxu0 0.0
        %2106 = vmatpush1.msra.mxu0 0.0
        %2107 = vmatprep.subr.mxu0 0.0
        %2108 = vmatpush1.msra.mxu0 0.0
        %2109 = vmatprep.subr.mxu0 0.0
        %2110 = vmatpush1.msra.mxu0 0.0
        %2111 = vmatprep.subr.mxu0 0.0
        %2112 = vmatpush1.msra.mxu0 0.0
        %2113 = vmatprep.subr.mxu0 0.0
        %2114 = vmatpush1.msra.mxu0 0.0
        %2115 = vmatprep.subr.mxu0 0.0
        %2116 = vmatpush1.msra.mxu0 0.0
        %2117 = vmatprep.subr.mxu0 0.0
        %2118 = vmatpush1.msra.mxu0 0.0
        %2119 = vmatprep.subr.mxu0 0.0
        %2120 = vmatpush1.msra.mxu0 0.0
        %2121 = vmatprep.subr.mxu0 0.0
        %2122 = vmatpush1.msra.mxu0 0.0
        %2123 = vmatprep.mubr.f32.mxu0 0.0
        %2124 = vmatmul.mubr.f32.gmra.mrb[0].mxu0 %v2057
        %v2125 = vpop.f32.mrb[0].mxu0
        %v2126 = vadd.f32 %v2053, %v2125
        %v2127 = vpop.f32.mrb[0].mxu0
        %2128 = vdwg.mxu0
        %v2129 = vld [vmem:[#allocation14] sm:$0xff]
        %v2130 = vld [vmem:[#allocation14 + $0x8] sm:$0xff]
        %v2131 = vld [vmem:[#allocation14 + $0x10] sm:$0xff]
        %v2132 = vld [vmem:[#allocation14 + $0x18] sm:$0xff]
        %2133 = vmatprep.subr.mxu0 0.0
        %2134 = vmatpush1.msra.mxu0 %v2129
        %2135 = vmatprep.subr.mxu0 0.0
        %2136 = vmatpush1.msra.mxu0 %v2130
        %2137 = vmatprep.subr.mxu0 0.0
        %2138 = vmatpush1.msra.mxu0 %v2131
        %2139 = vmatprep.subr.mxu0 0.0
        %2140 = vmatpush1.msra.mxu0 %v2132
        %2141 = vmatprep.subr.mxu0 0.0
        %2142 = vmatpush1.msra.mxu0 0.0
        %2143 = vmatprep.subr.mxu0 0.0
        %2144 = vmatpush1.msra.mxu0 0.0
        %2145 = vmatprep.subr.mxu0 0.0
        %2146 = vmatpush1.msra.mxu0 0.0
        %2147 = vmatprep.subr.mxu0 0.0
        %2148 = vmatpush1.msra.mxu0 0.0
        %2149 = vmatprep.subr.mxu0 0.0
        %2150 = vmatpush1.msra.mxu0 0.0
        %2151 = vmatprep.subr.mxu0 0.0
        %2152 = vmatpush1.msra.mxu0 0.0
        %2153 = vmatprep.subr.mxu0 0.0
        %2154 = vmatpush1.msra.mxu0 0.0
        %2155 = vmatprep.subr.mxu0 0.0
        %2156 = vmatpush1.msra.mxu0 0.0
        %2157 = vmatprep.subr.mxu0 0.0
        %2158 = vmatpush1.msra.mxu0 0.0
        %2159 = vmatprep.subr.mxu0 0.0
        %2160 = vmatpush1.msra.mxu0 0.0
        %2161 = vmatprep.subr.mxu0 0.0
        %2162 = vmatpush1.msra.mxu0 0.0
        %2163 = vmatprep.subr.mxu0 0.0
        %2164 = vmatpush1.msra.mxu0 0.0
        %2165 = vmatprep.subr.mxu0 0.0
        %2166 = vmatpush1.msra.mxu0 0.0
        %2167 = vmatprep.subr.mxu0 0.0
        %2168 = vmatpush1.msra.mxu0 0.0
        %2169 = vmatprep.subr.mxu0 0.0
        %2170 = vmatpush1.msra.mxu0 0.0
        %2171 = vmatprep.subr.mxu0 0.0
        %2172 = vmatpush1.msra.mxu0 0.0
        %2173 = vmatprep.subr.mxu0 0.0
        %2174 = vmatpush1.msra.mxu0 0.0
        %2175 = vmatprep.subr.mxu0 0.0
        %2176 = vmatpush1.msra.mxu0 0.0
        %2177 = vmatprep.subr.mxu0 0.0
        %2178 = vmatpush1.msra.mxu0 0.0
        %2179 = vmatprep.subr.mxu0 0.0
        %2180 = vmatpush1.msra.mxu0 0.0
        %2181 = vmatprep.subr.mxu0 0.0
        %2182 = vmatpush1.msra.mxu0 0.0
        %2183 = vmatprep.subr.mxu0 0.0
        %2184 = vmatpush1.msra.mxu0 0.0
        %2185 = vmatprep.subr.mxu0 0.0
        %2186 = vmatpush1.msra.mxu0 0.0
        %2187 = vmatprep.subr.mxu0 0.0
        %2188 = vmatpush1.msra.mxu0 0.0
        %2189 = vmatprep.subr.mxu0 0.0
        %2190 = vmatpush1.msra.mxu0 0.0
        %2191 = vmatprep.subr.mxu0 0.0
        %2192 = vmatpush1.msra.mxu0 0.0
        %2193 = vmatprep.subr.mxu0 0.0
        %2194 = vmatpush1.msra.mxu0 0.0
        %2195 = vmatprep.subr.mxu0 0.0
        %2196 = vmatpush1.msra.mxu0 0.0
        %2197 = vmatprep.mubr.f32.mxu0 0.0
        %2198 = vmatmul.mubr.f32.gmra.mrb[0].mxu0 %v980
        %v2199 = vpop.f32.mrb[0].mxu0
        %v2200 = vadd.f32 0.0, %v2199
        %v2201 = vpop.f32.mrb[0].mxu0
        %2202 = vdwg.mxu0
        %v2203 = vadd.f32 %v2126, %v2200
        %v2204 = vld [vmem:[%s18] sm:$0x1]
        %v2206 = vlaneseq
        %v2207 = vshrl.u32 %v2206, 7
        %v2208 = vsub.s32 0, %v2207
        %v2209 = vrot.slane %v2204, %v2208
        %v2211 = vadd.f32 %v2203, %v2209
        %v2212 = vxor.u32 %v2211, 2147483648
        %v2213 = vmul.f32 %v2212, 1.442695
        %v2214 = vpow.pop %v2213
        %v2215 = vadd.f32 %v2214, 1.0
        %v2216 = vrcp.pop %v2215
        %v2217 = vmul.f32 1.0, %v2216
        %v2218 = vtanh.pop %v2211
        %2220 = vrot.lane.b32.xlu0 %v803, 32
        %v2221 = vpop.permute.xlu0 %2220
        %v2223 = vmul.f32 %v2217, %v2221
        %2225 = vrot.lane.b32.xlu0 %v2218, 64
        %v2226 = vpop.permute.xlu0 %2225
        %v2228 = vmul.f32 %v2217, %v2226
        %2230 = vrot.lane.b32.xlu0 %v2228, 32
        %v2231 = vpop.permute.xlu0 %2230
        %v2233 = vadd.f32 %v2223, %v2231
        %v2234 = vtanh.pop %v2233
        %2236 = vrot.lane.b32.xlu0 %v2234, 64
        %v2237 = vpop.permute.xlu0 %2236
        %v2239 = vmul.f32 %v2217, %v2237
        %v2240 = vld [vmem:[#allocation16] sm:$0xff]
        %v2241 = vld [vmem:[#allocation16 + $0x8] sm:$0xff]
        %v2242 = vld [vmem:[#allocation16 + $0x10] sm:$0xff]
        %v2243 = vld [vmem:[#allocation16 + $0x18] sm:$0xff]
        %v2244 = vld [vmem:[%s20] sm:$0x1]
        %v2246 = vlaneseq
        %v2247 = vshrl.u32 %v2246, 7
        %v2248 = vsub.s32 0, %v2247
        %v2249 = vrot.slane %v2244, %v2248
        %2252 = vrot.lane.b32.xlu0 %v2239, 32
        %v2253 = vpop.permute.xlu0 %2252
        %v2254 = vsel %vm978, %v2253, 0
        %2256 = vmatprep.subr.mxu0 0.0
        %2257 = vmatpush1.msra.mxu0 %v2240
        %2258 = vmatprep.subr.mxu0 0.0
        %2259 = vmatpush1.msra.mxu0 %v2241
        %2260 = vmatprep.subr.mxu0 0.0
        %2261 = vmatpush1.msra.mxu0 %v2242
        %2262 = vmatprep.subr.mxu0 0.0
        %2263 = vmatpush1.msra.mxu0 %v2243
        %2264 = vmatprep.subr.mxu0 0.0
        %2265 = vmatpush1.msra.mxu0 0.0
        %2266 = vmatprep.subr.mxu0 0.0
        %2267 = vmatpush1.msra.mxu0 0.0
        %2268 = vmatprep.subr.mxu0 0.0
        %2269 = vmatpush1.msra.mxu0 0.0
        %2270 = vmatprep.subr.mxu0 0.0
        %2271 = vmatpush1.msra.mxu0 0.0
        %2272 = vmatprep.subr.mxu0 0.0
        %2273 = vmatpush1.msra.mxu0 0.0
        %2274 = vmatprep.subr.mxu0 0.0
        %2275 = vmatpush1.msra.mxu0 0.0
        %2276 = vmatprep.subr.mxu0 0.0
        %2277 = vmatpush1.msra.mxu0 0.0
        %2278 = vmatprep.subr.mxu0 0.0
        %2279 = vmatpush1.msra.mxu0 0.0
        %2280 = vmatprep.subr.mxu0 0.0
        %2281 = vmatpush1.msra.mxu0 0.0
        %2282 = vmatprep.subr.mxu0 0.0
        %2283 = vmatpush1.msra.mxu0 0.0
        %2284 = vmatprep.subr.mxu0 0.0
        %2285 = vmatpush1.msra.mxu0 0.0
        %2286 = vmatprep.subr.mxu0 0.0
        %2287 = vmatpush1.msra.mxu0 0.0
        %2288 = vmatprep.subr.mxu0 0.0
        %2289 = vmatpush1.msra.mxu0 0.0
        %2290 = vmatprep.subr.mxu0 0.0
        %2291 = vmatpush1.msra.mxu0 0.0
        %2292 = vmatprep.subr.mxu0 0.0
        %2293 = vmatpush1.msra.mxu0 0.0
        %2294 = vmatprep.subr.mxu0 0.0
        %2295 = vmatpush1.msra.mxu0 0.0
        %2296 = vmatprep.subr.mxu0 0.0
        %2297 = vmatpush1.msra.mxu0 0.0
        %2298 = vmatprep.subr.mxu0 0.0
        %2299 = vmatpush1.msra.mxu0 0.0
        %2300 = vmatprep.subr.mxu0 0.0
        %2301 = vmatpush1.msra.mxu0 0.0
        %2302 = vmatprep.subr.mxu0 0.0
        %2303 = vmatpush1.msra.mxu0 0.0
        %2304 = vmatprep.subr.mxu0 0.0
        %2305 = vmatpush1.msra.mxu0 0.0
        %2306 = vmatprep.subr.mxu0 0.0
        %2307 = vmatpush1.msra.mxu0 0.0
        %2308 = vmatprep.subr.mxu0 0.0
        %2309 = vmatpush1.msra.mxu0 0.0
        %2310 = vmatprep.subr.mxu0 0.0
        %2311 = vmatpush1.msra.mxu0 0.0
        %2312 = vmatprep.subr.mxu0 0.0
        %2313 = vmatpush1.msra.mxu0 0.0
        %2314 = vmatprep.subr.mxu0 0.0
        %2315 = vmatpush1.msra.mxu0 0.0
        %2316 = vmatprep.subr.mxu0 0.0
        %2317 = vmatpush1.msra.mxu0 0.0
        %2318 = vmatprep.subr.mxu0 0.0
        %2319 = vmatpush1.msra.mxu0 0.0
        %2320 = vmatprep.mubr.f32.mxu0 0.0
        %2321 = vmatmul.mubr.f32.gmra.mrb[0].mxu0 %v2254
        %v2322 = vpop.f32.mrb[0].mxu0
        %v2323 = vadd.f32 %v2249, %v2322
        %v2324 = vpop.f32.mrb[0].mxu0
        %2325 = vdwg.mxu0
        %vm2326 = vcmask 519168
        %v2327 = vsel %vm2326, %v2323, -inf
        %2328 = vmax.xlane.f32.xlu0 %v2327
        %v2329 = vpop.xlane.xlu0 %2328
        %v2330 = vsub.f32 %v2323, %v2329
        %v2331 = vmul.f32 %v2330, 1.442695
        %v2332 = vpow.pop %v2331
        %v2333 = vsel %vm2326, %v2332, 0.0
        %2334 = vadd.xlane.f32.xlu0 %v2333
        %v2335 = vpop.xlane.xlu0 %2334
        %v2336 = vrcp.pop %v2335
        %v2337 = vmul.f32 %v2332, %v2336
        %v2338 = vld [vmem:[%s0] sm:$0xf]
        %v2339 = vstv %s45
        %vm2340 = vcmp.gt.s32.totalorder %v2338, %v2339
        %v2341 = vsel %vm2340, 1, 0
        %v2342 = vcvt.s32.f32 %v2341
        %v2344 = vsel %vm1077, %v2342, 0
        %2346 = vmatprep.subr.mxu0 0.0
        %2347 = vmatpush1.msra.mxu0 %v2344
        %2348 = vmatprep.subr.mxu0 0.0
        %2349 = vmatpush1.msra.mxu0 0.0
        %2350 = vmatprep.subr.mxu0 0.0
        %2351 = vmatpush1.msra.mxu0 0.0
        %2352 = vmatprep.subr.mxu0 0.0
        %2353 = vmatpush1.msra.mxu0 0.0
        %2354 = vmatprep.subr.mxu0 0.0
        %2355 = vmatpush1.msra.mxu0 0.0
        %2356 = vmatprep.subr.mxu0 0.0
        %2357 = vmatpush1.msra.mxu0 0.0
        %2358 = vmatprep.subr.mxu0 0.0
        %2359 = vmatpush1.msra.mxu0 0.0
        %2360 = vmatprep.subr.mxu0 0.0
        %2361 = vmatpush1.msra.mxu0 0.0
        %2362 = vmatprep.subr.mxu0 0.0
        %2363 = vmatpush1.msra.mxu0 0.0
        %2364 = vmatprep.subr.mxu0 0.0
        %2365 = vmatpush1.msra.mxu0 0.0
        %2366 = vmatprep.subr.mxu0 0.0
        %2367 = vmatpush1.msra.mxu0 0.0
        %2368 = vmatprep.subr.mxu0 0.0
        %2369 = vmatpush1.msra.mxu0 0.0
        %2370 = vmatprep.subr.mxu0 0.0
        %2371 = vmatpush1.msra.mxu0 0.0
        %2372 = vmatprep.subr.mxu0 0.0
        %2373 = vmatpush1.msra.mxu0 0.0
        %2374 = vmatprep.subr.mxu0 0.0
        %2375 = vmatpush1.msra.mxu0 0.0
        %2376 = vmatprep.subr.mxu0 0.0
        %2377 = vmatpush1.msra.mxu0 0.0
        %2378 = vmatprep.subr.mxu0 0.0
        %2379 = vmatpush1.msra.mxu0 0.0
        %2380 = vmatprep.subr.mxu0 0.0
        %2381 = vmatpush1.msra.mxu0 0.0
        %2382 = vmatprep.subr.mxu0 0.0
        %2383 = vmatpush1.msra.mxu0 0.0
        %2384 = vmatprep.subr.mxu0 0.0
        %2385 = vmatpush1.msra.mxu0 0.0
        %2386 = vmatprep.subr.mxu0 0.0
        %2387 = vmatpush1.msra.mxu0 0.0
        %2388 = vmatprep.subr.mxu0 0.0
        %2389 = vmatpush1.msra.mxu0 0.0
        %2390 = vmatprep.subr.mxu0 0.0
        %2391 = vmatpush1.msra.mxu0 0.0
        %2392 = vmatprep.subr.mxu0 0.0
        %2393 = vmatpush1.msra.mxu0 0.0
        %2394 = vmatprep.subr.mxu0 0.0
        %2395 = vmatpush1.msra.mxu0 0.0
        %2396 = vmatprep.subr.mxu0 0.0
        %2397 = vmatpush1.msra.mxu0 0.0
        %2398 = vmatprep.subr.mxu0 0.0
        %2399 = vmatpush1.msra.mxu0 0.0
        %2400 = vmatprep.subr.mxu0 0.0
        %2401 = vmatpush1.msra.mxu0 0.0
        %2402 = vmatprep.subr.mxu0 0.0
        %2403 = vmatpush1.msra.mxu0 0.0
        %2404 = vmatprep.subr.mxu0 0.0
        %2405 = vmatpush1.msra.mxu0 0.0
        %2406 = vmatprep.subr.mxu0 0.0
        %2407 = vmatpush1.msra.mxu0 0.0
        %2408 = vmatprep.subr.mxu0 0.0
        %2409 = vmatpush1.msra.mxu0 0.0
        %2410 = vmatprep.mubr.f32.mxu0 0.0
        %2411 = vmatmul.mubr.f32.gmra.mrb[0].mxu0 %v1054
        %v2412 = vpop.f32.mrb[0].mxu0
        %v2413 = vadd.f32 0.0, %v2412
        %v2414 = vpop.f32.mrb[0].mxu0
        %2415 = vmatprep.mubr.f32.mxu0 0.0
        %2416 = vmatmul.mubr.f32.gmra.mrb[0].mxu0 %v1057
        %v2417 = vpop.f32.mrb[0].mxu0
        %v2418 = vadd.f32 0.0, %v2417
        %v2419 = vpop.f32.mrb[0].mxu0
        %2420 = vmatprep.mubr.f32.mxu0 0.0
        %2421 = vmatmul.mubr.f32.gmra.mrb[0].mxu0 %v1060
        %v2422 = vpop.f32.mrb[0].mxu0
        %v2423 = vadd.f32 0.0, %v2422
        %v2424 = vpop.f32.mrb[0].mxu0
        %2425 = vmatprep.mubr.f32.mxu0 0.0
        %2426 = vmatmul.mubr.f32.gmra.mrb[0].mxu0 %v1063
        %v2427 = vpop.f32.mrb[0].mxu0
        %v2428 = vadd.f32 0.0, %v2427
        %v2429 = vpop.f32.mrb[0].mxu0
        %2430 = vmatprep.mubr.f32.mxu0 0.0
        %2431 = vmatmul.mubr.f32.gmra.mrb[0].mxu0 %v1066
        %v2432 = vpop.f32.mrb[0].mxu0
        %v2433 = vadd.f32 0.0, %v2432
        %v2434 = vpop.f32.mrb[0].mxu0
        %2435 = vmatprep.mubr.f32.mxu0 0.0
        %2436 = vmatmul.mubr.f32.gmra.mrb[0].mxu0 %v1069
        %v2437 = vpop.f32.mrb[0].mxu0
        %v2438 = vadd.f32 0.0, %v2437
        %v2439 = vpop.f32.mrb[0].mxu0
        %2440 = vmatprep.mubr.f32.mxu0 0.0
        %2441 = vmatmul.mubr.f32.gmra.mrb[0].mxu0 %v1072
        %v2442 = vpop.f32.mrb[0].mxu0
        %v2443 = vadd.f32 0.0, %v2442
        %v2444 = vpop.f32.mrb[0].mxu0
        %2445 = vmatprep.mubr.f32.mxu0 0.0
        %2446 = vmatmul.mubr.f32.gmra.mrb[0].mxu0 %v1075
        %v2447 = vpop.f32.mrb[0].mxu0
        %v2448 = vadd.f32 0.0, %v2447
        %v2449 = vpop.f32.mrb[0].mxu0
        %2450 = vdwg.mxu0
        %2451 = vset.pattern.permute.xlu0 0
        %2452 = vperm.xlu0 %2451, %v2342
        %v2453 = vpop.permute.xlu0 %2452
        %v2455 = vmul.f32 %v2337, %v2453
        %2456 = vst.msk [vmem:[%s780] sm:$0xf] %vm2326, %v2455
        %v2457 = vmul.f32 %v1757, %v2413
        %v2458 = vmul.f32 %v1758, %v2418
        %v2459 = vmul.f32 %v1759, %v2423
        %v2460 = vmul.f32 %v1760, %v2428
        %v2461 = vmul.f32 %v1761, %v2433
        %v2462 = vmul.f32 %v1762, %v2438
        %v2463 = vmul.f32 %v1763, %v2443
        %v2464 = vmul.f32 %v1764, %v2448
        %2465 = vst.msk [vmem:[%s792] sm:$0xff] %vm1342, %v2457
        %2466 = vst.msk [vmem:[%s792 + $0x8] sm:$0xff] %vm1342, %v2458
        %2467 = vst.msk [vmem:[%s792 + $0x10] sm:$0xff] %vm1342, %v2459
        %2468 = vst.msk [vmem:[%s792 + $0x18] sm:$0xff] %vm1342, %v2460
        %2469 = vst.msk [vmem:[%s792 + $0x20] sm:$0xff] %vm1342, %v2461
        %2470 = vst.msk [vmem:[%s792 + $0x28] sm:$0xff] %vm1342, %v2462
        %2471 = vst.msk [vmem:[%s792 + $0x30] sm:$0xff] %vm1342, %v2463
        %2472 = vst.msk [vmem:[%s792 + $0x38] sm:$0xff] %vm1342, %v2464
        %2473 = vset.pattern.permute.xlu0 0
        %2474 = vperm.xlu0 %2473, %v2341
        %v2475 = vpop.permute.xlu0 %2474
        %vm2476 = vcmp.eq.s32.totalorder %v2475, 1
        %2477 = vrot.lane.b32.xlu0 %v802, 96
        %v2478 = vpop.permute.xlu0 %2477
        %v2480 = vsel %vm2476, %v2239, %v2478
        %2482 = vrot.lane.b32.xlu0 %v2480, 32
        %v2483 = vpop.permute.xlu0 %2482
        %vm2485 = vcmask 257024
        %2486 = vst.msk [vmem:[#allocation2] sm:$0xf] %vm2485, %v2483
        %v2487 = vsel %vm2476, %v2233, %v2221
        %2489 = vrot.lane.b32.xlu0 %v2487, 96
        %v2490 = vpop.permute.xlu0 %2489
        %2492 = vst.msk [vmem:[#allocation3] sm:$0xf] %vm2485, %v2490
        %s2493 = sand.u32 %s499, 1
        %s2494 = scalar_lea.sflag [#allocation7], %s2493
        %s2495 = sand.u32 %s499, 1
        %s2496 = smul.addr %s2495, 4
        %s2497 = scalar_lea.vmem [#allocation17], %s2496
        %p2498 = scmp.lt.s32.totalorder %s45, 6
        %s2499 = scalar_select %p2498, %s45, 6
        %s2500 = smul.addr %s2499, 8
        %s2501 = smul.addr %s2500, 8
        %s2502 = scalar_lea.vmem %s22, %s2501
        // Predicated region
        $region137: #{tpu_custom_call.1} parent=103 // pred_check
          %p2503 = pneg %p509
        $region138: #{tpu_custom_call.1} parent=103 // pred_check_branch
          %2505 = sbr.rel (%p2503) target = $region140
        $region139: #{tpu_custom_call.1} parent=103 // pred_region
          %s2507 = ssub.s32 64, 64
          %2508 = vsyncadd %s2494, %s2507
          %s2509 = smul.addr %s45, 64
          %s2510 = scalar_lea.hbm %s21, %s2509
          %s2512 = sshll.u32 %s2497, 4
          %s2513 = int_to_ptr.vmem [resolvable:$true] %s2512
          %2515 = dma.vmem_to_hbm [thread:$0]  %s2513, 64, %s2510, %s2494
        $region140: #{tpu_custom_call.1} parent=103 // pred_fallthru
          _
        // Predicated region
        $region141: #{tpu_custom_call.1} parent=103 // pred_check
          %p2516 = pneg %p535
        $region142: #{tpu_custom_call.1} parent=103 // pred_check_branch
          %2518 = sbr.rel (%p2516) target = $region144
        $region143: #{tpu_custom_call.1} parent=103 // pred_region
          _
        $region144: #{tpu_custom_call.1} parent=103 // pred_fallthru
          _
      $region104: #{tpu_custom_call.1} parent=5 // pred_fallthru
        _
      %p2519 = scmp.le.s32.totalorder 2, %s40
      // Predicated region
      $region145: #{tpu_custom_call.1} parent=5 // pred_check
        %p2520 = pneg %p2519
      $region146: #{tpu_custom_call.1} parent=5 // pred_check_branch
        %2522 = sbr.rel (%p2520) target = $region148
      $region147: #{tpu_custom_call.1} parent=5 // pred_region
        %s2523 = ssub.s32 %s40, 2
        // Predicated region
        $region149: #{tpu_custom_call.1} parent=147 // pred_check
          %p2524 = pneg %p515
        $region150: #{tpu_custom_call.1} parent=147 // pred_check_branch
          %2526 = sbr.rel (%p2524) target = $region152
        $region151: #{tpu_custom_call.1} parent=147 // pred_region
          %s2527 = sand.u32 %s500, 1
          %s2528 = scalar_lea.sflag [#allocation7], %s2527
          %s2529 = sand.u32 %s500, 1
          %s2530 = smul.addr %s2529, 4
          %s2531 = scalar_lea.vmem [#allocation17], %s2530
          %2532 = dma.done %s2528, 64
        $region152: #{tpu_custom_call.1} parent=147 // pred_fallthru
          _
        // Predicated region
        $region153: #{tpu_custom_call.1} parent=147 // pred_check
          %p2533 = pneg %p541
        $region154: #{tpu_custom_call.1} parent=147 // pred_check_branch
          %2535 = sbr.rel (%p2533) target = $region156
        $region155: #{tpu_custom_call.1} parent=147 // pred_region
          %p2536 = scmp.lt.s32.totalorder %s46, 6
          %s2537 = scalar_select %p2536, %s46, 6
          %s2538 = smul.addr %s2537, 8
          %s2539 = smul.addr %s2538, 8
          %s2540 = scalar_lea.vmem %s22, %s2539
        $region156: #{tpu_custom_call.1} parent=147 // pred_fallthru
          _
      $region148: #{tpu_custom_call.1} parent=5 // pred_fallthru
        _
    $region6: #{tpu_custom_call.1} parent=1 // loop_footer
      %s44 = sadd.s32 1, %s40
    $region7: #{tpu_custom_call.1} parent=1 // loop_footer_branch
      %39 = sbr.rel target = $region3
    $region8: #{tpu_custom_call.1} parent=1 // loop_exit
      _
    %2541 = vsyncpa [#allocation6], 1
    %s2542 = scalar_lea.sflag [#allocation6], 1
    %2543 = vsyncpa %s2542, 1
    %2544 = vsyncpa [#allocation9], 1
    %2545 = vsyncpa [#allocation12], 1
    %s2546 = scalar_lea.sflag [#allocation12], 1
    %2547 = vsyncpa %s2546, 1
    %2548 = vsyncpa [#allocation15], 1
    %2549 = vsyncpa [#allocation7], 1
    %s2550 = scalar_lea.sflag [#allocation7], 1
    %2551 = vsyncpa %s2550, 1

</llo_original>
